<compile_context>
chip_gen: v6e
topology: v6e:2x2x1
jax: 0.10.0
libtpu: 0.0.40
codegen_flags: <defaults>
</compile_context>

<pallas_src>
import functools

import jax
import jax.numpy as jnp
from jax.experimental import pallas as pl
from jax.experimental.pallas import tpu as pltpu

# ------------------------------ config (small) --------------------------------
BATCH = 2
SEQ = 8
HIDDEN = 32
N_HEADS = 2
HEAD_DIM = HIDDEN // N_HEADS
INTERMEDIATE = 64
N_LAYERS = 2
VOCAB = 100
TYPE_VOCAB = 2
MAX_POS = 16
LN_EPS = 1e-12


# ------------------------------ in-kernel helpers ------------------------------
def _ln(x, g, b):
    """LayerNorm over the last dim, f32 math."""
    mu = jnp.mean(x, axis=-1, keepdims=True)
    xc = x - mu
    var = jnp.mean(xc * xc, axis=-1, keepdims=True)
    return xc * jax.lax.rsqrt(var + LN_EPS) * g + b


# ------------------------------ the fused kernel --------------------------------
def _fine_bert_kernel(emb_ref, bias_ref, embg_ref, embb_ref,
                      wqkv_ref, bqkv_ref, wo_ref, bo_ref, ln1g_ref, ln1b_ref,
                      wi_ref, bi_ref, wfo_ref, bfo_ref, ln2g_ref, ln2b_ref,
                      pw_ref, pb_ref, ow_ref, ob_ref,
                      out_ref, h_ref, *, n_heads, head_dim):
    l = pl.program_id(0)
    H = n_heads * head_dim

    # Embedding LayerNorm fused into the first grid step; the residual stream
    # then lives in VMEM scratch for the whole encoder stack.
    @pl.when(l == 0)
    def _():
        h_ref[...] = _ln(emb_ref[...], embg_ref[...], embb_ref[...])

    h = h_ref[...]                       # (B*S, H) f32 residual stream
    bias = bias_ref[...]                 # (B*S, B*S) additive mask (pad + batch-block)

    # ---- attention sub-block: fused QKV proj (1/sqrt(d) pre-folded into Q) ----
    qkv = jnp.dot(h.astype(jnp.bfloat16), wqkv_ref[0],
                  preferred_element_type=jnp.float32) + bqkv_ref[0]      # (B*S, 3H)
    wo = wo_ref[0]                       # (H, H) bf16
    attn = jnp.zeros_like(h)
    for hd in range(n_heads):            # static unroll; no concat of head outputs
        sl = slice(hd * head_dim, (hd + 1) * head_dim)
        qh = qkv[:, sl].astype(jnp.bfloat16)
        kh = qkv[:, H + hd * head_dim:H + (hd + 1) * head_dim].astype(jnp.bfloat16)
        vh = qkv[:, 2 * H + hd * head_dim:2 * H + (hd + 1) * head_dim].astype(jnp.bfloat16)
        s = jax.lax.dot_general(qh, kh, (((1,), (1,)), ((), ())),
                                preferred_element_type=jnp.float32)      # (B*S, B*S)
        s = s + bias
        s = s - jnp.max(s, axis=-1, keepdims=True)
        p = jnp.exp(s)
        p = p * pl.reciprocal(jnp.sum(p, axis=-1, keepdims=True), approx=True)
        ctx = jnp.dot(p.astype(jnp.bfloat16), vh,
                      preferred_element_type=jnp.float32)                # (B*S, d)
        # per-head rows of the output projection, accumulated in f32 (no concat)
        attn = attn + jnp.dot(ctx.astype(jnp.bfloat16), wo[sl, :],
                              preferred_element_type=jnp.float32)
    attn = attn + bo_ref[0]
    h1 = _ln(attn + h, ln1g_ref[0], ln1b_ref[0])

    # ---- FFN sub-block: the (B*S, I) intermediate never touches HBM ----
    u = jnp.dot(h1.astype(jnp.bfloat16), wi_ref[0],
                preferred_element_type=jnp.float32) + bi_ref[0]
    # TODO(synk): HF BERT uses erf GELU; tanh approximation kept for robust lowering.
    u = jax.nn.gelu(u, approximate=True)
    y = jnp.dot(u.astype(jnp.bfloat16), wfo_ref[0],
                preferred_element_type=jnp.float32) + bfo_ref[0]
    h2 = _ln(y + h1, ln2g_ref[0], ln2b_ref[0])
    h_ref[...] = h2

    # ---- pooler (tanh dense) + Linear(H,1) fused into the last grid step ----
    @pl.when(l == pl.num_programs(0) - 1)
    def _():
        pooled = jnp.tanh(jnp.dot(h2.astype(jnp.bfloat16), pw_ref[...],
                                  preferred_element_type=jnp.float32) + pb_ref[...])
        out_ref[...] = (jnp.dot(pooled.astype(jnp.bfloat16), ow_ref[...],
                                preferred_element_type=jnp.float32)
                        + ob_ref[...]).astype(out_ref.dtype)


def bert_encoder_logits(emb2d, bias_full, w):
    """Single pallas_call: emb-LN -> N_LAYERS transformer layers -> pooler -> logit.

    Returns per-row logits (B*S, 1); the wrapper selects the [CLS] rows."""
    BS, H = emb2d.shape
    L = w["wqkv"].shape[0]
    I = w["wi"].shape[2]
    kernel = functools.partial(_fine_bert_kernel, n_heads=N_HEADS, head_dim=HEAD_DIM)

    def const(shape):                       # layer-invariant block (fetched once)
        return pl.BlockSpec(shape, lambda l: (0,) * len(shape))

    def per_layer(shape):                   # layer-stacked weight panel
        return pl.BlockSpec((1,) + shape, lambda l: (l,) + (0,) * len(shape))

    return pl.pallas_call(
        kernel,
        out_shape=jax.ShapeDtypeStruct((BS, 1), jnp.float32),
        grid=(L,),
        in_specs=[
            const((BS, H)),                                   # embeddings (pre-LN)
            const((BS, BS)),                                  # additive attention mask
            const((1, H)), const((1, H)),                     # embedding LN gamma/beta
            per_layer((H, 3 * H)), per_layer((1, 3 * H)),     # fused QKV weight/bias
            per_layer((H, H)), per_layer((1, H)),             # attn out proj weight/bias
            per_layer((1, H)), per_layer((1, H)),             # attn LN gamma/beta
            per_layer((H, I)), per_layer((1, I)),             # FFN in weight/bias
            per_layer((I, H)), per_layer((1, H)),             # FFN out weight/bias
            per_layer((1, H)), per_layer((1, H)),             # FFN LN gamma/beta
            const((H, H)), const((1, H)),                     # pooler weight/bias
            const((H, 1)), const((1, 1)),                     # final Linear(H,1)
        ],
        out_specs=const((BS, 1)),
        scratch_shapes=[pltpu.VMEM((BS, H), jnp.float32)],    # resident residual stream
        compiler_params=pltpu.CompilerParams(
            dimension_semantics=("arbitrary",)),
    )(emb2d, bias_full, w["emb_g"], w["emb_b"],
      w["wqkv"], w["bqkv"], w["wo"], w["bo"], w["ln1g"], w["ln1b"],
      w["wi"], w["bi"], w["wfo"], w["bfo"], w["ln2g"], w["ln2b"],
      w["pw"], w["pb"], w["ow"], w["ob"])


# ------------------------------ parameters ------------------------------------
def init_params(key):
    keys = iter(jax.random.split(key, 64))

    def nrm(shape):
        return 0.02 * jax.random.normal(next(keys), shape, dtype=jnp.float32)

    params = {
        "word_emb": nrm((VOCAB, HIDDEN)),
        "pos_emb": nrm((MAX_POS, HIDDEN)),
        "type_emb": nrm((TYPE_VOCAB, HIDDEN)),
        "emb_ln_g": jnp.ones((HIDDEN,), jnp.float32),
        "emb_ln_b": jnp.zeros((HIDDEN,), jnp.float32),
        "layers": [],
        "pooler_w": nrm((HIDDEN, HIDDEN)),
        "pooler_b": jnp.zeros((HIDDEN,), jnp.float32),
        "out_w": nrm((HIDDEN, 1)),          # torch Linear(768,1) analogue
        "out_b": jnp.zeros((1,), jnp.float32),
    }
    for _ in range(N_LAYERS):
        params["layers"].append({
            "q_w": nrm((HIDDEN, HIDDEN)), "q_b": jnp.zeros((HIDDEN,), jnp.float32),
            "k_w": nrm((HIDDEN, HIDDEN)), "k_b": jnp.zeros((HIDDEN,), jnp.float32),
            "v_w": nrm((HIDDEN, HIDDEN)), "v_b": jnp.zeros((HIDDEN,), jnp.float32),
            "ao_w": nrm((HIDDEN, HIDDEN)), "ao_b": jnp.zeros((HIDDEN,), jnp.float32),
            "attn_ln_g": jnp.ones((HIDDEN,), jnp.float32),
            "attn_ln_b": jnp.zeros((HIDDEN,), jnp.float32),
            "fi_w": nrm((HIDDEN, INTERMEDIATE)), "fi_b": jnp.zeros((INTERMEDIATE,), jnp.float32),
            "fo_w": nrm((INTERMEDIATE, HIDDEN)), "fo_b": jnp.zeros((HIDDEN,), jnp.float32),
            "ffn_ln_g": jnp.ones((HIDDEN,), jnp.float32),
            "ffn_ln_b": jnp.zeros((HIDDEN,), jnp.float32),
        })
    return params


def prepare_params(params):
    """One-time weight prep: QKV fusion, 1/sqrt(d) folding, bf16 casts, layer stacking."""
    scale = 1.0 / (HEAD_DIM ** 0.5)
    layers = params["layers"]

    def stack(fn, dtype=None):
        arr = jnp.stack([fn(ly) for ly in layers])
        return arr.astype(dtype) if dtype is not None else arr

    return {
        "word_emb": params["word_emb"],
        "pos_emb": params["pos_emb"],
        "type_emb": params["type_emb"],
        "emb_g": params["emb_ln_g"].reshape(1, HIDDEN),
        "emb_b": params["emb_ln_b"].reshape(1, HIDDEN),
        "wqkv": stack(lambda ly: jnp.concatenate(
            [ly["q_w"] * scale, ly["k_w"], ly["v_w"]], axis=1), jnp.bfloat16),
        "bqkv": stack(lambda ly: jnp.concatenate(
            [ly["q_b"] * scale, ly["k_b"], ly["v_b"]]).reshape(1, 3 * HIDDEN)),
        "wo": stack(lambda ly: ly["ao_w"], jnp.bfloat16),
        "bo": stack(lambda ly: ly["ao_b"].reshape(1, HIDDEN)),
        "ln1g": stack(lambda ly: ly["attn_ln_g"].reshape(1, HIDDEN)),
        "ln1b": stack(lambda ly: ly["attn_ln_b"].reshape(1, HIDDEN)),
        "wi": stack(lambda ly: ly["fi_w"], jnp.bfloat16),
        "bi": stack(lambda ly: ly["fi_b"].reshape(1, INTERMEDIATE)),
        "wfo": stack(lambda ly: ly["fo_w"], jnp.bfloat16),
        "bfo": stack(lambda ly: ly["fo_b"].reshape(1, HIDDEN)),
        "ln2g": stack(lambda ly: ly["ffn_ln_g"].reshape(1, HIDDEN)),
        "ln2b": stack(lambda ly: ly["ffn_ln_b"].reshape(1, HIDDEN)),
        "pw": params["pooler_w"].astype(jnp.bfloat16),
        "pb": params["pooler_b"].reshape(1, HIDDEN),
        "ow": params["out_w"].astype(jnp.bfloat16),
        "ob": params["out_b"].reshape(1, 1),
    }


# ------------------------------ forward ----------------------------------------
@jax.jit
def fine_bert_forward(prep, ids, mask, token_type_ids):
    B, S = ids.shape
    # Embedding gathers are XLA glue; everything downstream is one Pallas kernel.
    emb = (prep["word_emb"][ids]
           + prep["pos_emb"][jnp.arange(S)][None, :, :]
           + prep["type_emb"][token_type_ids])                      # (B, S, H)
    emb2 = emb.reshape(B * S, HIDDEN)

    # Combined additive attention bias over flattened keys:
    #   BERT padding bias (-10000) within a batch block, -1e9 across batches.
    pad_bias = (1.0 - mask.astype(jnp.float32)) * -10000.0          # (B, S)
    key_bias = pad_bias.reshape(1, B * S)
    batch_id = jnp.repeat(jnp.arange(B), S)
    same_batch = batch_id[:, None] == batch_id[None, :]
    bias_full = jnp.where(same_batch, key_bias, -1e9)               # (B*S, B*S)

    logits_all = bert_encoder_logits(emb2, bias_full, prep)         # (B*S, 1)
    return logits_all.reshape(B, S, 1)[:, 0, :]                     # [CLS] rows -> (B, 1)


# ------------------------------ main --------------------------------------------
if __name__ == "__main__":
    key = jax.random.PRNGKey(0)
    pkey, ikey = jax.random.split(key)
    params = init_params(pkey)
    prep = prepare_params(params)        # one-time weight prep (not per forward)

    ids = jax.random.randint(ikey, (BATCH, SEQ), 0, VOCAB, dtype=jnp.int32)
    mask = jnp.ones((BATCH, SEQ), dtype=jnp.int32).at[1, SEQ - 2:].set(0)  # pad tail of row 1
    token_type_ids = jnp.zeros((BATCH, SEQ), dtype=jnp.int32)

    out = fine_bert_forward(prep, ids, mask, token_type_ids)
    out = jax.block_until_ready(out)
    assert out.shape == (BATCH, 1) and out.dtype == jnp.float32
    assert bool(jnp.all(jnp.isfinite(out)))
    print("KERNEL_OK")
</pallas_src>

<mosaic_0001>
module attributes {stable_mosaic.version = 11 : i64} {
  func.func @_fine_bert_kernel(%arg0: i32, %arg1: memref<16x32xf32, #tpu.memory_space<vmem>>, %arg2: memref<16x16xf32, #tpu.memory_space<vmem>>, %arg3: memref<1x32xf32, #tpu.memory_space<vmem>>, %arg4: memref<1x32xf32, #tpu.memory_space<vmem>>, %arg5: memref<1x32x96xbf16, #tpu.memory_space<vmem>>, %arg6: memref<1x1x96xf32, #tpu.memory_space<vmem>>, %arg7: memref<1x32x32xbf16, #tpu.memory_space<vmem>>, %arg8: memref<1x1x32xf32, #tpu.memory_space<vmem>>, %arg9: memref<1x1x32xf32, #tpu.memory_space<vmem>>, %arg10: memref<1x1x32xf32, #tpu.memory_space<vmem>>, %arg11: memref<1x32x64xbf16, #tpu.memory_space<vmem>>, %arg12: memref<1x1x64xf32, #tpu.memory_space<vmem>>, %arg13: memref<1x64x32xbf16, #tpu.memory_space<vmem>>, %arg14: memref<1x1x32xf32, #tpu.memory_space<vmem>>, %arg15: memref<1x1x32xf32, #tpu.memory_space<vmem>>, %arg16: memref<1x1x32xf32, #tpu.memory_space<vmem>>, %arg17: memref<32x32xbf16, #tpu.memory_space<vmem>>, %arg18: memref<1x32xf32, #tpu.memory_space<vmem>>, %arg19: memref<32x1xbf16, #tpu.memory_space<vmem>>, %arg20: memref<1x1xf32, #tpu.memory_space<vmem>>, %arg21: memref<16x1xf32, #tpu.memory_space<vmem>>, %arg22: memref<16x32xf32, #tpu.memory_space<vmem>>) attributes {dimension_semantics = [#tpu.dimension_semantics<arbitrary>], iteration_bounds = array<i64: 2>, scalar_prefetch = 0 : i64, scratch_operands = 1 : i64, tpu.core_type = #tpu.core_type<tc>, window_params = [{pipeline_mode = #tpu.pipeline_mode<synchronous>, transform_indices = @transform_0, window_bounds = array<i64: 16, 32>}, {pipeline_mode = #tpu.pipeline_mode<synchronous>, transform_indices = @transform_1, window_bounds = array<i64: 16, 16>}, {pipeline_mode = #tpu.pipeline_mode<synchronous>, transform_indices = @transform_2, window_bounds = array<i64: 1, 32>}, {pipeline_mode = #tpu.pipeline_mode<synchronous>, transform_indices = @transform_3, window_bounds = array<i64: 1, 32>}, {transform_indices = @transform_4, window_bounds = array<i64: 1, 32, 96>}, {transform_indices = @transform_5, window_bounds = array<i64: 1, 1, 96>}, {transform_indices = @transform_6, window_bounds = array<i64: 1, 32, 32>}, {transform_indices = @transform_7, window_bounds = array<i64: 1, 1, 32>}, {transform_indices = @transform_8, window_bounds = array<i64: 1, 1, 32>}, {transform_indices = @transform_9, window_bounds = array<i64: 1, 1, 32>}, {transform_indices = @transform_10, window_bounds = array<i64: 1, 32, 64>}, {transform_indices = @transform_11, window_bounds = array<i64: 1, 1, 64>}, {transform_indices = @transform_12, window_bounds = array<i64: 1, 64, 32>}, {transform_indices = @transform_13, window_bounds = array<i64: 1, 1, 32>}, {transform_indices = @transform_14, window_bounds = array<i64: 1, 1, 32>}, {transform_indices = @transform_15, window_bounds = array<i64: 1, 1, 32>}, {pipeline_mode = #tpu.pipeline_mode<synchronous>, transform_indices = @transform_16, window_bounds = array<i64: 32, 32>}, {pipeline_mode = #tpu.pipeline_mode<synchronous>, transform_indices = @transform_17, window_bounds = array<i64: 1, 32>}, {pipeline_mode = #tpu.pipeline_mode<synchronous>, transform_indices = @transform_18, window_bounds = array<i64: 32, 1>}, {pipeline_mode = #tpu.pipeline_mode<synchronous>, transform_indices = @transform_19, window_bounds = array<i64: 1, 1>}, {pipeline_mode = #tpu.pipeline_mode<synchronous>, transform_indices = @transform_20, window_bounds = array<i64: 16, 1>}]} {
    %c0_i32 = arith.constant 0 : i32
    %0 = arith.cmpi eq, %arg0, %c0_i32 : i32
    %1 = arith.extui %0 : i1 to i32
    %c0_i32_0 = arith.constant 0 : i32
    %2 = arith.cmpi ne, %1, %c0_i32_0 : i32
    scf.if %2 {
      %c0_70 = arith.constant 0 : index
      %c0_71 = arith.constant 0 : index
      %151 = vector.load %arg1[%c0_70, %c0_71] : memref<16x32xf32, #tpu.memory_space<vmem>>, vector<16x32xf32>
      %c0_72 = arith.constant 0 : index
      %c0_73 = arith.constant 0 : index
      %152 = vector.load %arg3[%c0_72, %c0_73] : memref<1x32xf32, #tpu.memory_space<vmem>>, vector<1x32xf32>
      %c0_74 = arith.constant 0 : index
      %c0_75 = arith.constant 0 : index
      %153 = vector.load %arg4[%c0_74, %c0_75] : memref<1x32xf32, #tpu.memory_space<vmem>>, vector<1x32xf32>
      %cst_76 = arith.constant dense<0.000000e+00> : vector<16xf32>
      %154 = vector.multi_reduction <add>, %151, %cst_76 [1] : vector<16x32xf32> to vector<16xf32>
      %155 = vector.shape_cast %154 : vector<16xf32> to vector<16x1xf32>
      %cst_77 = arith.constant 3.200000e+01 : f32
      %156 = vector.broadcast %cst_77 : f32 to vector<16x1xf32>
      %157 = arith.divf %155, %156 : vector<16x1xf32>
      %158 = vector.broadcast %157 : vector<16x1xf32> to vector<16x32xf32>
      %159 = arith.subf %151, %158 : vector<16x32xf32>
      %160 = arith.mulf %159, %159 : vector<16x32xf32>
      %cst_78 = arith.constant dense<0.000000e+00> : vector<16xf32>
      %161 = vector.multi_reduction <add>, %160, %cst_78 [1] : vector<16x32xf32> to vector<16xf32>
      %162 = vector.shape_cast %161 : vector<16xf32> to vector<16x1xf32>
      %cst_79 = arith.constant 3.200000e+01 : f32
      %163 = vector.broadcast %cst_79 : f32 to vector<16x1xf32>
      %164 = arith.divf %162, %163 : vector<16x1xf32>
      %cst_80 = arith.constant 9.99999996E-13 : f32
      %165 = vector.broadcast %cst_80 : f32 to vector<16x1xf32>
      %166 = arith.addf %164, %165 : vector<16x1xf32>
      %167 = math.rsqrt %166 : vector<16x1xf32>
      %168 = vector.broadcast %167 : vector<16x1xf32> to vector<16x32xf32>
      %169 = arith.mulf %159, %168 : vector<16x32xf32>
      %170 = vector.broadcast %152 : vector<1x32xf32> to vector<16x32xf32>
      %171 = arith.mulf %169, %170 : vector<16x32xf32>
      %172 = vector.broadcast %153 : vector<1x32xf32> to vector<16x32xf32>
      %173 = arith.addf %171, %172 : vector<16x32xf32>
      %c0_81 = arith.constant 0 : index
      %c0_82 = arith.constant 0 : index
      %174 = vector.load %arg22[%c0_81, %c0_82] : memref<16x32xf32, #tpu.memory_space<vmem>>, vector<16x32xf32>
      tpu.vector_store %arg22[%c0_81, %c0_82], %173 {strides = array<i32>} : memref<16x32xf32, #tpu.memory_space<vmem>>, vector<16x32xf32>,
    } else {
    }
    %c0 = arith.constant 0 : index
    %c0_1 = arith.constant 0 : index
    %3 = vector.load %arg22[%c0, %c0_1] : memref<16x32xf32, #tpu.memory_space<vmem>>, vector<16x32xf32>
    %c0_2 = arith.constant 0 : index
    %c0_3 = arith.constant 0 : index
    %4 = vector.load %arg2[%c0_2, %c0_3] : memref<16x16xf32, #tpu.memory_space<vmem>>, vector<16x16xf32>
    %5 = arith.truncf %3 : vector<16x32xf32> to vector<16x32xbf16>
    %c0_4 = arith.constant 0 : index
    %c0_5 = arith.constant 0 : index
    %c0_6 = arith.constant 0 : index
    %6 = vector.load %arg5[%c0_4, %c0_5, %c0_6] : memref<1x32x96xbf16, #tpu.memory_space<vmem>>, vector<1x32x96xbf16>
    %7 = vector.shape_cast %6 : vector<1x32x96xbf16> to vector<32x96xbf16>
    %cst = arith.constant dense<0.000000e+00> : vector<16x96xf32>
    %8 = tpu.matmul %5, %7, %cst {dimension_numbers = #tpu.dot_dimension_numbers<[1], [0], [0], [1], [0, 0, 1, 1], [], []>} : vector<16x32xbf16>, vector<32x96xbf16>, vector<16x96xf32> -> vector<16x96xf32>
    %c0_7 = arith.constant 0 : index
    %c0_8 = arith.constant 0 : index
    %c0_9 = arith.constant 0 : index
    %9 = vector.load %arg6[%c0_7, %c0_8, %c0_9] : memref<1x1x96xf32, #tpu.memory_space<vmem>>, vector<1x1x96xf32>
    %10 = vector.shape_cast %9 : vector<1x1x96xf32> to vector<1x96xf32>
    %11 = vector.broadcast %10 : vector<1x96xf32> to vector<16x96xf32>
    %12 = arith.addf %8, %11 : vector<16x96xf32>
    %c0_10 = arith.constant 0 : index
    %c0_11 = arith.constant 0 : index
    %c0_12 = arith.constant 0 : index
    %13 = vector.load %arg7[%c0_10, %c0_11, %c0_12] : memref<1x32x32xbf16, #tpu.memory_space<vmem>>, vector<1x32x32xbf16>
    %14 = vector.shape_cast %13 : vector<1x32x32xbf16> to vector<32x32xbf16>
    %cst_13 = arith.constant 0.000000e+00 : f32
    %15 = vector.broadcast %cst_13 : f32 to vector<16x32xf32>
    %16 = vector.extract_strided_slice %12 {offsets = [0, 0], sizes = [16, 16], strides = [1, 1]} : vector<16x96xf32> to vector<16x16xf32>
    %17 = arith.truncf %16 : vector<16x16xf32> to vector<16x16xbf16>
    %18 = vector.extract_strided_slice %12 {offsets = [0, 32], sizes = [16, 16], strides = [1, 1]} : vector<16x96xf32> to vector<16x16xf32>
    %19 = arith.truncf %18 : vector<16x16xf32> to vector<16x16xbf16>
    %20 = vector.extract_strided_slice %12 {offsets = [0, 64], sizes = [16, 16], strides = [1, 1]} : vector<16x96xf32> to vector<16x16xf32>
    %21 = arith.truncf %20 : vector<16x16xf32> to vector<16x16xbf16>
    %cst_14 = arith.constant dense<0.000000e+00> : vector<16x16xf32>
    %22 = tpu.matmul %17, %19, %cst_14 {dimension_numbers = #tpu.dot_dimension_numbers<[1], [1], [0], [0], [0, 0, 1, 0], [], []>} : vector<16x16xbf16>, vector<16x16xbf16>, vector<16x16xf32> -> vector<16x16xf32>
    %23 = arith.addf %22, %4 : vector<16x16xf32>
    %cst_15 = arith.constant dense<0xFF800000> : vector<16xf32>
    %24 = vector.multi_reduction <maximumf>, %23, %cst_15 [1] : vector<16x16xf32> to vector<16xf32>
    %25 = vector.shape_cast %24 : vector<16xf32> to vector<16x1xf32>
    %26 = vector.broadcast %25 : vector<16x1xf32> to vector<16x16xf32>
    %27 = arith.subf %23, %26 : vector<16x16xf32>
    %28 = math.exp %27 : vector<16x16xf32>
    %cst_16 = arith.constant dense<0.000000e+00> : vector<16xf32>
    %29 = vector.multi_reduction <add>, %28, %cst_16 [1] : vector<16x16xf32> to vector<16xf32>
    %30 = vector.shape_cast %29 : vector<16xf32> to vector<16x1xf32>
    %31 = tpu.reciprocal %30 {approx = true} : vector<16x1xf32> -> vector<16x1xf32>
    %32 = vector.broadcast %31 : vector<16x1xf32> to vector<16x16xf32>
    %33 = arith.mulf %28, %32 : vector<16x16xf32>
    %34 = arith.truncf %33 : vector<16x16xf32> to vector<16x16xbf16>
    %cst_17 = arith.constant dense<0.000000e+00> : vector<16x16xf32>
    %35 = tpu.matmul %34, %21, %cst_17 {dimension_numbers = #tpu.dot_dimension_numbers<[1], [0], [0], [1], [0, 0, 1, 1], [], []>} : vector<16x16xbf16>, vector<16x16xbf16>, vector<16x16xf32> -> vector<16x16xf32>
    %36 = arith.truncf %35 : vector<16x16xf32> to vector<16x16xbf16>
    %37 = vector.extract_strided_slice %14 {offsets = [0, 0], sizes = [16, 32], strides = [1, 1]} : vector<32x32xbf16> to vector<16x32xbf16>
    %cst_18 = arith.constant dense<0.000000e+00> : vector<16x32xf32>
    %38 = tpu.matmul %36, %37, %cst_18 {dimension_numbers = #tpu.dot_dimension_numbers<[1], [0], [0], [1], [0, 0, 1, 1], [], []>} : vector<16x16xbf16>, vector<16x32xbf16>, vector<16x32xf32> -> vector<16x32xf32>
    %39 = arith.addf %15, %38 : vector<16x32xf32>
    %40 = vector.extract_strided_slice %12 {offsets = [0, 16], sizes = [16, 16], strides = [1, 1]} : vector<16x96xf32> to vector<16x16xf32>
    %41 = arith.truncf %40 : vector<16x16xf32> to vector<16x16xbf16>
    %42 = vector.extract_strided_slice %12 {offsets = [0, 48], sizes = [16, 16], strides = [1, 1]} : vector<16x96xf32> to vector<16x16xf32>
    %43 = arith.truncf %42 : vector<16x16xf32> to vector<16x16xbf16>
    %44 = vector.extract_strided_slice %12 {offsets = [0, 80], sizes = [16, 16], strides = [1, 1]} : vector<16x96xf32> to vector<16x16xf32>
    %45 = arith.truncf %44 : vector<16x16xf32> to vector<16x16xbf16>
    %cst_19 = arith.constant dense<0.000000e+00> : vector<16x16xf32>
    %46 = tpu.matmul %41, %43, %cst_19 {dimension_numbers = #tpu.dot_dimension_numbers<[1], [1], [0], [0], [0, 0, 1, 0], [], []>} : vector<16x16xbf16>, vector<16x16xbf16>, vector<16x16xf32> -> vector<16x16xf32>
    %47 = arith.addf %46, %4 : vector<16x16xf32>
    %cst_20 = arith.constant dense<0xFF800000> : vector<16xf32>
    %48 = vector.multi_reduction <maximumf>, %47, %cst_20 [1] : vector<16x16xf32> to vector<16xf32>
    %49 = vector.shape_cast %48 : vector<16xf32> to vector<16x1xf32>
    %50 = vector.broadcast %49 : vector<16x1xf32> to vector<16x16xf32>
    %51 = arith.subf %47, %50 : vector<16x16xf32>
    %52 = math.exp %51 : vector<16x16xf32>
    %cst_21 = arith.constant dense<0.000000e+00> : vector<16xf32>
    %53 = vector.multi_reduction <add>, %52, %cst_21 [1] : vector<16x16xf32> to vector<16xf32>
    %54 = vector.shape_cast %53 : vector<16xf32> to vector<16x1xf32>
    %55 = tpu.reciprocal %54 {approx = true} : vector<16x1xf32> -> vector<16x1xf32>
    %56 = vector.broadcast %55 : vector<16x1xf32> to vector<16x16xf32>
    %57 = arith.mulf %52, %56 : vector<16x16xf32>
    %58 = arith.truncf %57 : vector<16x16xf32> to vector<16x16xbf16>
    %cst_22 = arith.constant dense<0.000000e+00> : vector<16x16xf32>
    %59 = tpu.matmul %58, %45, %cst_22 {dimension_numbers = #tpu.dot_dimension_numbers<[1], [0], [0], [1], [0, 0, 1, 1], [], []>} : vector<16x16xbf16>, vector<16x16xbf16>, vector<16x16xf32> -> vector<16x16xf32>
    %60 = arith.truncf %59 : vector<16x16xf32> to vector<16x16xbf16>
    %61 = vector.extract_strided_slice %14 {offsets = [16, 0], sizes = [16, 32], strides = [1, 1]} : vector<32x32xbf16> to vector<16x32xbf16>
    %cst_23 = arith.constant dense<0.000000e+00> : vector<16x32xf32>
    %62 = tpu.matmul %60, %61, %cst_23 {dimension_numbers = #tpu.dot_dimension_numbers<[1], [0], [0], [1], [0, 0, 1, 1], [], []>} : vector<16x16xbf16>, vector<16x32xbf16>, vector<16x32xf32> -> vector<16x32xf32>
    %63 = arith.addf %39, %62 : vector<16x32xf32>
    %c0_24 = arith.constant 0 : index
    %c0_25 = arith.constant 0 : index
    %c0_26 = arith.constant 0 : index
    %64 = vector.load %arg8[%c0_24, %c0_25, %c0_26] : memref<1x1x32xf32, #tpu.memory_space<vmem>>, vector<1x1x32xf32>
    %65 = vector.shape_cast %64 : vector<1x1x32xf32> to vector<1x32xf32>
    %66 = vector.broadcast %65 : vector<1x32xf32> to vector<16x32xf32>
    %67 = arith.addf %63, %66 : vector<16x32xf32>
    %68 = arith.addf %67, %3 : vector<16x32xf32>
    %c0_27 = arith.constant 0 : index
    %c0_28 = arith.constant 0 : index
    %c0_29 = arith.constant 0 : index
    %69 = vector.load %arg9[%c0_27, %c0_28, %c0_29] : memref<1x1x32xf32, #tpu.memory_space<vmem>>, vector<1x1x32xf32>
    %70 = vector.shape_cast %69 : vector<1x1x32xf32> to vector<1x32xf32>
    %c0_30 = arith.constant 0 : index
    %c0_31 = arith.constant 0 : index
    %c0_32 = arith.constant 0 : index
    %71 = vector.load %arg10[%c0_30, %c0_31, %c0_32] : memref<1x1x32xf32, #tpu.memory_space<vmem>>, vector<1x1x32xf32>
    %72 = vector.shape_cast %71 : vector<1x1x32xf32> to vector<1x32xf32>
    %cst_33 = arith.constant dense<0.000000e+00> : vector<16xf32>
    %73 = vector.multi_reduction <add>, %68, %cst_33 [1] : vector<16x32xf32> to vector<16xf32>
    %74 = vector.shape_cast %73 : vector<16xf32> to vector<16x1xf32>
    %cst_34 = arith.constant 3.200000e+01 : f32
    %75 = vector.broadcast %cst_34 : f32 to vector<16x1xf32>
    %76 = arith.divf %74, %75 : vector<16x1xf32>
    %77 = vector.broadcast %76 : vector<16x1xf32> to vector<16x32xf32>
    %78 = arith.subf %68, %77 : vector<16x32xf32>
    %79 = arith.mulf %78, %78 : vector<16x32xf32>
    %cst_35 = arith.constant dense<0.000000e+00> : vector<16xf32>
    %80 = vector.multi_reduction <add>, %79, %cst_35 [1] : vector<16x32xf32> to vector<16xf32>
    %81 = vector.shape_cast %80 : vector<16xf32> to vector<16x1xf32>
    %cst_36 = arith.constant 3.200000e+01 : f32
    %82 = vector.broadcast %cst_36 : f32 to vector<16x1xf32>
    %83 = arith.divf %81, %82 : vector<16x1xf32>
    %cst_37 = arith.constant 9.99999996E-13 : f32
    %84 = vector.broadcast %cst_37 : f32 to vector<16x1xf32>
    %85 = arith.addf %83, %84 : vector<16x1xf32>
    %86 = math.rsqrt %85 : vector<16x1xf32>
    %87 = vector.broadcast %86 : vector<16x1xf32> to vector<16x32xf32>
    %88 = arith.mulf %78, %87 : vector<16x32xf32>
    %89 = vector.broadcast %70 : vector<1x32xf32> to vector<16x32xf32>
    %90 = arith.mulf %88, %89 : vector<16x32xf32>
    %91 = vector.broadcast %72 : vector<1x32xf32> to vector<16x32xf32>
    %92 = arith.addf %90, %91 : vector<16x32xf32>
    %93 = arith.truncf %92 : vector<16x32xf32> to vector<16x32xbf16>
    %c0_38 = arith.constant 0 : index
    %c0_39 = arith.constant 0 : index
    %c0_40 = arith.constant 0 : index
    %94 = vector.load %arg11[%c0_38, %c0_39, %c0_40] : memref<1x32x64xbf16, #tpu.memory_space<vmem>>, vector<1x32x64xbf16>
    %95 = vector.shape_cast %94 : vector<1x32x64xbf16> to vector<32x64xbf16>
    %cst_41 = arith.constant dense<0.000000e+00> : vector<16x64xf32>
    %96 = tpu.matmul %93, %95, %cst_41 {dimension_numbers = #tpu.dot_dimension_numbers<[1], [0], [0], [1], [0, 0, 1, 1], [], []>} : vector<16x32xbf16>, vector<32x64xbf16>, vector<16x64xf32> -> vector<16x64xf32>
    %c0_42 = arith.constant 0 : index
    %c0_43 = arith.constant 0 : index
    %c0_44 = arith.constant 0 : index
    %97 = vector.load %arg12[%c0_42, %c0_43, %c0_44] : memref<1x1x64xf32, #tpu.memory_space<vmem>>, vector<1x1x64xf32>
    %98 = vector.shape_cast %97 : vector<1x1x64xf32> to vector<1x64xf32>
    %99 = vector.broadcast %98 : vector<1x64xf32> to vector<16x64xf32>
    %100 = arith.addf %96, %99 : vector<16x64xf32>
    %101 = arith.mulf %100, %100 : vector<16x64xf32>
    %102 = arith.mulf %100, %101 : vector<16x64xf32>
    %cst_45 = arith.constant 4.471500e-02 : f32
    %103 = vector.broadcast %cst_45 : f32 to vector<16x64xf32>
    %104 = arith.mulf %103, %102 : vector<16x64xf32>
    %105 = arith.addf %100, %104 : vector<16x64xf32>
    %cst_46 = arith.constant 0.797884583 : f32
    %106 = vector.broadcast %cst_46 : f32 to vector<16x64xf32>
    %107 = arith.mulf %106, %105 : vector<16x64xf32>
    %108 = math.tanh %107 : vector<16x64xf32>
    %cst_47 = arith.constant 1.000000e+00 : f32
    %109 = vector.broadcast %cst_47 : f32 to vector<16x64xf32>
    %110 = arith.addf %109, %108 : vector<16x64xf32>
    %cst_48 = arith.constant 5.000000e-01 : f32
    %111 = vector.broadcast %cst_48 : f32 to vector<16x64xf32>
    %112 = arith.mulf %111, %110 : vector<16x64xf32>
    %113 = arith.mulf %100, %112 : vector<16x64xf32>
    %114 = arith.truncf %113 : vector<16x64xf32> to vector<16x64xbf16>
    %c0_49 = arith.constant 0 : index
    %c0_50 = arith.constant 0 : index
    %c0_51 = arith.constant 0 : index
    %115 = vector.load %arg13[%c0_49, %c0_50, %c0_51] : memref<1x64x32xbf16, #tpu.memory_space<vmem>>, vector<1x64x32xbf16>
    %116 = vector.shape_cast %115 : vector<1x64x32xbf16> to vector<64x32xbf16>
    %cst_52 = arith.constant dense<0.000000e+00> : vector<16x32xf32>
    %117 = tpu.matmul %114, %116, %cst_52 {dimension_numbers = #tpu.dot_dimension_numbers<[1], [0], [0], [1], [0, 0, 1, 1], [], []>} : vector<16x64xbf16>, vector<64x32xbf16>, vector<16x32xf32> -> vector<16x32xf32>
    %c0_53 = arith.constant 0 : index
    %c0_54 = arith.constant 0 : index
    %c0_55 = arith.constant 0 : index
    %118 = vector.load %arg14[%c0_53, %c0_54, %c0_55] : memref<1x1x32xf32, #tpu.memory_space<vmem>>, vector<1x1x32xf32>
    %119 = vector.shape_cast %118 : vector<1x1x32xf32> to vector<1x32xf32>
    %120 = vector.broadcast %119 : vector<1x32xf32> to vector<16x32xf32>
    %121 = arith.addf %117, %120 : vector<16x32xf32>
    %122 = arith.addf %121, %92 : vector<16x32xf32>
    %c0_56 = arith.constant 0 : index
    %c0_57 = arith.constant 0 : index
    %c0_58 = arith.constant 0 : index
    %123 = vector.load %arg15[%c0_56, %c0_57, %c0_58] : memref<1x1x32xf32, #tpu.memory_space<vmem>>, vector<1x1x32xf32>
    %124 = vector.shape_cast %123 : vector<1x1x32xf32> to vector<1x32xf32>
    %c0_59 = arith.constant 0 : index
    %c0_60 = arith.constant 0 : index
    %c0_61 = arith.constant 0 : index
    %125 = vector.load %arg16[%c0_59, %c0_60, %c0_61] : memref<1x1x32xf32, #tpu.memory_space<vmem>>, vector<1x1x32xf32>
    %126 = vector.shape_cast %125 : vector<1x1x32xf32> to vector<1x32xf32>
    %cst_62 = arith.constant dense<0.000000e+00> : vector<16xf32>
    %127 = vector.multi_reduction <add>, %122, %cst_62 [1] : vector<16x32xf32> to vector<16xf32>
    %128 = vector.shape_cast %127 : vector<16xf32> to vector<16x1xf32>
    %cst_63 = arith.constant 3.200000e+01 : f32
    %129 = vector.broadcast %cst_63 : f32 to vector<16x1xf32>
    %130 = arith.divf %128, %129 : vector<16x1xf32>
    %131 = vector.broadcast %130 : vector<16x1xf32> to vector<16x32xf32>
    %132 = arith.subf %122, %131 : vector<16x32xf32>
    %133 = arith.mulf %132, %132 : vector<16x32xf32>
    %cst_64 = arith.constant dense<0.000000e+00> : vector<16xf32>
    %134 = vector.multi_reduction <add>, %133, %cst_64 [1] : vector<16x32xf32> to vector<16xf32>
    %135 = vector.shape_cast %134 : vector<16xf32> to vector<16x1xf32>
    %cst_65 = arith.constant 3.200000e+01 : f32
    %136 = vector.broadcast %cst_65 : f32 to vector<16x1xf32>
    %137 = arith.divf %135, %136 : vector<16x1xf32>
    %cst_66 = arith.constant 9.99999996E-13 : f32
    %138 = vector.broadcast %cst_66 : f32 to vector<16x1xf32>
    %139 = arith.addf %137, %138 : vector<16x1xf32>
    %140 = math.rsqrt %139 : vector<16x1xf32>
    %141 = vector.broadcast %140 : vector<16x1xf32> to vector<16x32xf32>
    %142 = arith.mulf %132, %141 : vector<16x32xf32>
    %143 = vector.broadcast %124 : vector<1x32xf32> to vector<16x32xf32>
    %144 = arith.mulf %142, %143 : vector<16x32xf32>
    %145 = vector.broadcast %126 : vector<1x32xf32> to vector<16x32xf32>
    %146 = arith.addf %144, %145 : vector<16x32xf32>
    %c0_67 = arith.constant 0 : index
    %c0_68 = arith.constant 0 : index
    %147 = vector.load %arg22[%c0_67, %c0_68] : memref<16x32xf32, #tpu.memory_space<vmem>>, vector<16x32xf32>
    tpu.vector_store %arg22[%c0_67, %c0_68], %146 {strides = array<i32>} : memref<16x32xf32, #tpu.memory_space<vmem>>, vector<16x32xf32>,
    %c1_i32 = arith.constant 1 : i32
    %148 = arith.cmpi eq, %arg0, %c1_i32 : i32
    %149 = arith.extui %148 : i1 to i32
    %c0_i32_69 = arith.constant 0 : i32
    %150 = arith.cmpi ne, %149, %c0_i32_69 : i32
    scf.if %150 {
      %151 = arith.truncf %146 : vector<16x32xf32> to vector<16x32xbf16>
      %c0_70 = arith.constant 0 : index
      %c0_71 = arith.constant 0 : index
      %152 = vector.load %arg17[%c0_70, %c0_71] : memref<32x32xbf16, #tpu.memory_space<vmem>>, vector<32x32xbf16>
      %cst_72 = arith.constant dense<0.000000e+00> : vector<16x32xf32>
      %153 = tpu.matmul %151, %152, %cst_72 {dimension_numbers = #tpu.dot_dimension_numbers<[1], [0], [0], [1], [0, 0, 1, 1], [], []>} : vector<16x32xbf16>, vector<32x32xbf16>, vector<16x32xf32> -> vector<16x32xf32>
      %c0_73 = arith.constant 0 : index
      %c0_74 = arith.constant 0 : index
      %154 = vector.load %arg18[%c0_73, %c0_74] : memref<1x32xf32, #tpu.memory_space<vmem>>, vector<1x32xf32>
      %155 = vector.broadcast %154 : vector<1x32xf32> to vector<16x32xf32>
      %156 = arith.addf %153, %155 : vector<16x32xf32>
      %157 = math.tanh %156 : vector<16x32xf32>
      %158 = arith.truncf %157 : vector<16x32xf32> to vector<16x32xbf16>
      %c0_75 = arith.constant 0 : index
      %c0_76 = arith.constant 0 : index
      %159 = vector.load %arg19[%c0_75, %c0_76] : memref<32x1xbf16, #tpu.memory_space<vmem>>, vector<32x1xbf16>
      %cst_77 = arith.constant dense<0.000000e+00> : vector<16x1xf32>
      %160 = tpu.matmul %158, %159, %cst_77 {dimension_numbers = #tpu.dot_dimension_numbers<[1], [0], [0], [1], [0, 0, 1, 1], [], []>} : vector<16x32xbf16>, vector<32x1xbf16>, vector<16x1xf32> -> vector<16x1xf32>
      %c0_78 = arith.constant 0 : index
      %c0_79 = arith.constant 0 : index
      %161 = vector.load %arg20[%c0_78, %c0_79] : memref<1x1xf32, #tpu.memory_space<vmem>>, vector<1x1xf32>
      %162 = vector.broadcast %161 : vector<1x1xf32> to vector<16x1xf32>
      %163 = arith.addf %160, %162 : vector<16x1xf32>
      %c0_80 = arith.constant 0 : index
      %c0_81 = arith.constant 0 : index
      %164 = vector.load %arg21[%c0_80, %c0_81] : memref<16x1xf32, #tpu.memory_space<vmem>>, vector<16x1xf32>
      tpu.vector_store %arg21[%c0_80, %c0_81], %163 {strides = array<i32>} : memref<16x1xf32, #tpu.memory_space<vmem>>, vector<16x1xf32>,
    } else {
    }
    return
  }
  func.func @transform_0(%arg0: i32) -> (i32, i32) {
    %c0_i32 = arith.constant 0 : i32
    %c0_i32_0 = arith.constant 0 : i32
    %c0_i32_1 = arith.constant 0 : i32
    return %c0_i32, %c0_i32_0 : i32, i32
  }
  func.func @transform_1(%arg0: i32) -> (i32, i32) {
    %c0_i32 = arith.constant 0 : i32
    %c0_i32_0 = arith.constant 0 : i32
    %c0_i32_1 = arith.constant 0 : i32
    return %c0_i32, %c0_i32_0 : i32, i32
  }
  func.func @transform_2(%arg0: i32) -> (i32, i32) {
    %c0_i32 = arith.constant 0 : i32
    %c0_i32_0 = arith.constant 0 : i32
    %c0_i32_1 = arith.constant 0 : i32
    return %c0_i32, %c0_i32_0 : i32, i32
  }
  func.func @transform_3(%arg0: i32) -> (i32, i32) {
    %c0_i32 = arith.constant 0 : i32
    %c0_i32_0 = arith.constant 0 : i32
    %c0_i32_1 = arith.constant 0 : i32
    return %c0_i32, %c0_i32_0 : i32, i32
  }
  func.func @transform_4(%arg0: i32) -> (i32, i32, i32) {
    %c0_i32 = arith.constant 0 : i32
    %c0_i32_0 = arith.constant 0 : i32
    %c0_i32_1 = arith.constant 0 : i32
    return %arg0, %c0_i32, %c0_i32_0 : i32, i32, i32
  }
  func.func @transform_5(%arg0: i32) -> (i32, i32, i32) {
    %c0_i32 = arith.constant 0 : i32
    %c0_i32_0 = arith.constant 0 : i32
    %c0_i32_1 = arith.constant 0 : i32
    return %arg0, %c0_i32, %c0_i32_0 : i32, i32, i32
  }
  func.func @transform_6(%arg0: i32) -> (i32, i32, i32) {
    %c0_i32 = arith.constant 0 : i32
    %c0_i32_0 = arith.constant 0 : i32
    %c0_i32_1 = arith.constant 0 : i32
    return %arg0, %c0_i32, %c0_i32_0 : i32, i32, i32
  }
  func.func @transform_7(%arg0: i32) -> (i32, i32, i32) {
    %c0_i32 = arith.constant 0 : i32
    %c0_i32_0 = arith.constant 0 : i32
    %c0_i32_1 = arith.constant 0 : i32
    return %arg0, %c0_i32, %c0_i32_0 : i32, i32, i32
  }
  func.func @transform_8(%arg0: i32) -> (i32, i32, i32) {
    %c0_i32 = arith.constant 0 : i32
    %c0_i32_0 = arith.constant 0 : i32
    %c0_i32_1 = arith.constant 0 : i32
    return %arg0, %c0_i32, %c0_i32_0 : i32, i32, i32
  }
  func.func @transform_9(%arg0: i32) -> (i32, i32, i32) {
    %c0_i32 = arith.constant 0 : i32
    %c0_i32_0 = arith.constant 0 : i32
    %c0_i32_1 = arith.constant 0 : i32
    return %arg0, %c0_i32, %c0_i32_0 : i32, i32, i32
  }
  func.func @transform_10(%arg0: i32) -> (i32, i32, i32) {
    %c0_i32 = arith.constant 0 : i32
    %c0_i32_0 = arith.constant 0 : i32
    %c0_i32_1 = arith.constant 0 : i32
    return %arg0, %c0_i32, %c0_i32_0 : i32, i32, i32
  }
  func.func @transform_11(%arg0: i32) -> (i32, i32, i32) {
    %c0_i32 = arith.constant 0 : i32
    %c0_i32_0 = arith.constant 0 : i32
    %c0_i32_1 = arith.constant 0 : i32
    return %arg0, %c0_i32, %c0_i32_0 : i32, i32, i32
  }
  func.func @transform_12(%arg0: i32) -> (i32, i32, i32) {
    %c0_i32 = arith.constant 0 : i32
    %c0_i32_0 = arith.constant 0 : i32
    %c0_i32_1 = arith.constant 0 : i32
    return %arg0, %c0_i32, %c0_i32_0 : i32, i32, i32
  }
  func.func @transform_13(%arg0: i32) -> (i32, i32, i32) {
    %c0_i32 = arith.constant 0 : i32
    %c0_i32_0 = arith.constant 0 : i32
    %c0_i32_1 = arith.constant 0 : i32
    return %arg0, %c0_i32, %c0_i32_0 : i32, i32, i32
  }
  func.func @transform_14(%arg0: i32) -> (i32, i32, i32) {
    %c0_i32 = arith.constant 0 : i32
    %c0_i32_0 = arith.constant 0 : i32
    %c0_i32_1 = arith.constant 0 : i32
    return %arg0, %c0_i32, %c0_i32_0 : i32, i32, i32
  }
  func.func @transform_15(%arg0: i32) -> (i32, i32, i32) {
    %c0_i32 = arith.constant 0 : i32
    %c0_i32_0 = arith.constant 0 : i32
    %c0_i32_1 = arith.constant 0 : i32
    return %arg0, %c0_i32, %c0_i32_0 : i32, i32, i32
  }
  func.func @transform_16(%arg0: i32) -> (i32, i32) {
    %c0_i32 = arith.constant 0 : i32
    %c0_i32_0 = arith.constant 0 : i32
    %c0_i32_1 = arith.constant 0 : i32
    return %c0_i32, %c0_i32_0 : i32, i32
  }
  func.func @transform_17(%arg0: i32) -> (i32, i32) {
    %c0_i32 = arith.constant 0 : i32
    %c0_i32_0 = arith.constant 0 : i32
    %c0_i32_1 = arith.constant 0 : i32
    return %c0_i32, %c0_i32_0 : i32, i32
  }
  func.func @transform_18(%arg0: i32) -> (i32, i32) {
    %c0_i32 = arith.constant 0 : i32
    %c0_i32_0 = arith.constant 0 : i32
    %c0_i32_1 = arith.constant 0 : i32
    return %c0_i32, %c0_i32_0 : i32, i32
  }
  func.func @transform_19(%arg0: i32) -> (i32, i32) {
    %c0_i32 = arith.constant 0 : i32
    %c0_i32_0 = arith.constant 0 : i32
    %c0_i32_1 = arith.constant 0 : i32
    return %c0_i32, %c0_i32_0 : i32, i32
  }
  func.func @transform_20(%arg0: i32) -> (i32, i32) {
    %c0_i32 = arith.constant 0 : i32
    %c0_i32_0 = arith.constant 0 : i32
    %c0_i32_1 = arith.constant 0 : i32
    return %c0_i32, %c0_i32_0 : i32, i32
  }
}

</mosaic_0001>

<llo_original>
// kernel: fine_bert_forward.1
$region0: #{fine_bert_forward.1}
  #allocation0 [shape = 'u32[]', space=smem, size = 0x4, offset = 0x4, fixed_abs, tag = 'smem constant byte address 0x4 - core index']
  #allocation1 [shape = 'u32[144,128]{1,0:T(1,128)}', space=vmem, size = 0x12000, scoped, tag = 'internal scratch']
  #allocation2 [shape = 'f32[16,32]{1,0:T(8,128)}', space=vmem, size = 0x2000, scoped, tag = 'scratch operand']
  #allocation3 [shape = 'f32[1,1]{1,0:T(1,128)S(1)}', space=vmem, size = 0x200, scoped, tag = 'scoped memory for fine_bert_forward.1']
  %s0 = inlined_call_operand.vmem [shape: f32[16,32], index: 0, kind: input, shape index: {}]
  %s1 = inlined_call_operand.vmem [shape: f32[16,16], index: 1, kind: input, shape index: {}]
  %s2 = inlined_call_operand.vmem [shape: f32[1,32], index: 2, kind: input, shape index: {}]
  %s3 = inlined_call_operand.vmem [shape: f32[1,32], index: 3, kind: input, shape index: {}]
  %s4 = inlined_call_operand.vmem [shape: bf16[2,32,96], index: 4, kind: input, shape index: {}]
  %s5 = inlined_call_operand.vmem [shape: f32[2,1,96], index: 5, kind: input, shape index: {}]
  %s6 = inlined_call_operand.vmem [shape: bf16[2,32,32], index: 6, kind: input, shape index: {}]
  %s7 = inlined_call_operand.vmem [shape: f32[2,1,32], index: 7, kind: input, shape index: {}]
  %s8 = inlined_call_operand.vmem [shape: f32[2,1,32], index: 8, kind: input, shape index: {}]
  %s9 = inlined_call_operand.vmem [shape: f32[2,1,32], index: 9, kind: input, shape index: {}]
  %s10 = inlined_call_operand.vmem [shape: bf16[2,32,64], index: 10, kind: input, shape index: {}]
  %s11 = inlined_call_operand.vmem [shape: f32[2,1,64], index: 11, kind: input, shape index: {}]
  %s12 = inlined_call_operand.vmem [shape: bf16[2,64,32], index: 12, kind: input, shape index: {}]
  %s13 = inlined_call_operand.vmem [shape: f32[2,1,32], index: 13, kind: input, shape index: {}]
  %s14 = inlined_call_operand.vmem [shape: f32[2,1,32], index: 14, kind: input, shape index: {}]
  %s15 = inlined_call_operand.vmem [shape: f32[2,1,32], index: 15, kind: input, shape index: {}]
  %s16 = inlined_call_operand.vmem [shape: bf16[32,32], index: 16, kind: input, shape index: {}]
  %s17 = inlined_call_operand.vmem [shape: f32[1,32], index: 17, kind: input, shape index: {}]
  %s18 = inlined_call_operand.vmem [shape: bf16[32,1], index: 18, kind: input, shape index: {}]
  %s19 = inlined_call_operand.<no memory space> [shape: f32[1,1], index: 19, kind: input, shape index: {}]
  %s20 = inlined_call_operand.vmem [shape: f32[16,1], index: 20, kind: output, shape index: {}]
  %s21 = sld [smem:[#allocation0]]
  $region121: #{fine_bert_forward.1} parent=0
    _
  %s23 = ssub.s32 1, %s21
  %s24 = scalar_select 0, %s23, %s21
  %v25 = vstv %s19
  %26 = vst [vmem:[#allocation3] sm:$0x1] %v25
  loop: start=0, step=1, limit=4
  $region2: #{fine_bert_forward.1} parent=0 // loop_pre_header
    _
  $region3: #{fine_bert_forward.1} parent=0 // loop_header
    %s28 = sphi 0, %s32
    %p29 = scmp.ge.s32.totalorder %s28, 4
    %s36 = sphi 0, %s36
    %s38 = sphi 0, %s36
    %s39 = sphi 0, %s38
    %s53 = sphi 0, %s39
    %s57 = sphi 0, %s57
    %s59 = sphi 0, %s57
    %s60 = sphi 0, %s59
    %s74 = sphi 0, %s60
    %s78 = sphi 0, %s78
    %s80 = sphi 0, %s78
    %s81 = sphi 0, %s80
    %s95 = sphi 0, %s81
    %s99 = sphi 0, %s99
    %s101 = sphi 0, %s99
    %s102 = sphi 0, %s101
    %s116 = sphi 0, %s102
    %s122 = sphi 0, %s124
    %s125 = sphi 0, %s122
    %s126 = sphi 0, %s125
    %s142 = sphi 0, %s126
    %s148 = sphi 0, %s150
    %s151 = sphi 0, %s148
    %s152 = sphi 0, %s151
    %s168 = sphi 0, %s152
    %s174 = sphi 0, %s176
    %s177 = sphi 0, %s174
    %s178 = sphi 0, %s177
    %s194 = sphi 0, %s178
    %s200 = sphi 0, %s202
    %s203 = sphi 0, %s200
    %s204 = sphi 0, %s203
    %s220 = sphi 0, %s204
    %s226 = sphi 0, %s228
    %s229 = sphi 0, %s226
    %s230 = sphi 0, %s229
    %s246 = sphi 0, %s230
    %s252 = sphi 0, %s254
    %s255 = sphi 0, %s252
    %s256 = sphi 0, %s255
    %s272 = sphi 0, %s256
    %s278 = sphi 0, %s280
    %s281 = sphi 0, %s278
    %s282 = sphi 0, %s281
    %s298 = sphi 0, %s282
    %s304 = sphi 0, %s306
    %s307 = sphi 0, %s304
    %s308 = sphi 0, %s307
    %s324 = sphi 0, %s308
    %s330 = sphi 0, %s332
    %s333 = sphi 0, %s330
    %s334 = sphi 0, %s333
    %s350 = sphi 0, %s334
    %s356 = sphi 0, %s358
    %s359 = sphi 0, %s356
    %s360 = sphi 0, %s359
    %s376 = sphi 0, %s360
    %s382 = sphi 0, %s384
    %s385 = sphi 0, %s382
    %s386 = sphi 0, %s385
    %s402 = sphi 0, %s386
    %s408 = sphi 0, %s410
    %s411 = sphi 0, %s408
    %s412 = sphi 0, %s411
    %s428 = sphi 0, %s412
    %s432 = sphi 0, %s432
    %s434 = sphi 0, %s432
    %s435 = sphi 0, %s434
    %s449 = sphi 0, %s435
    %s453 = sphi 0, %s453
    %s455 = sphi 0, %s453
    %s456 = sphi 0, %s455
    %s470 = sphi 0, %s456
    %s474 = sphi 0, %s474
    %s476 = sphi 0, %s474
    %s477 = sphi 0, %s476
    %s491 = sphi 0, %s477
    %s495 = sphi 0, %s495
    %s497 = sphi 0, %s495
    %s498 = sphi 0, %s497
    %s512 = sphi 0, %s498
    %s516 = sphi 0, %s516
    %s518 = sphi 0, %s516
    %s519 = sphi 0, %s518
    %s533 = sphi 0, %s519
  $region4: #{fine_bert_forward.1} parent=0 // loop_header_branch
    %31 = sbr.rel (%p29) target = $region8
  $region5: #{fine_bert_forward.1} parent=0 // loop_body
    %s33 = ssub.s32 %s28, 1
    %s34 = ssub.s32 %s28, 2
    %s35 = sadd.s32 %s28, 1
    %s37 = sadd.s32 %s36, 1
    %p40 = scmp.eq.s32.totalorder %s28, 1
    %p41 = scmp.ne.s32.totalorder %s36, %s38
    %p42 = scmp.eq.s32.totalorder %s28, 0
    %p43 = por %p41, %p42
    %p44 = scmp.ne.s32.totalorder %s36, %s38
    %p45 = scmp.eq.s32.totalorder %s33, 1
    %p46 = por %p44, %p45
    %p47 = scmp.ne.s32.totalorder %s38, %s39
    %p48 = scmp.eq.s32.totalorder %s33, 0
    %p49 = por %p47, %p48
    %p50 = scmp.ne.s32.totalorder %s38, %s39
    %p51 = scmp.eq.s32.totalorder %s34, 1
    %p52 = por %p50, %p51
    %p54 = scmp.ne.s32.totalorder %s39, %s53
    %p55 = scmp.eq.s32.totalorder %s34, 0
    %p56 = por %p54, %p55
    %s58 = sadd.s32 %s57, 1
    %p61 = scmp.eq.s32.totalorder %s28, 1
    %p62 = scmp.ne.s32.totalorder %s57, %s59
    %p63 = scmp.eq.s32.totalorder %s28, 0
    %p64 = por %p62, %p63
    %p65 = scmp.ne.s32.totalorder %s57, %s59
    %p66 = scmp.eq.s32.totalorder %s33, 1
    %p67 = por %p65, %p66
    %p68 = scmp.ne.s32.totalorder %s59, %s60
    %p69 = scmp.eq.s32.totalorder %s33, 0
    %p70 = por %p68, %p69
    %p71 = scmp.ne.s32.totalorder %s59, %s60
    %p72 = scmp.eq.s32.totalorder %s34, 1
    %p73 = por %p71, %p72
    %p75 = scmp.ne.s32.totalorder %s60, %s74
    %p76 = scmp.eq.s32.totalorder %s34, 0
    %p77 = por %p75, %p76
    %s79 = sadd.s32 %s78, 1
    %p82 = scmp.eq.s32.totalorder %s28, 1
    %p83 = scmp.ne.s32.totalorder %s78, %s80
    %p84 = scmp.eq.s32.totalorder %s28, 0
    %p85 = por %p83, %p84
    %p86 = scmp.ne.s32.totalorder %s78, %s80
    %p87 = scmp.eq.s32.totalorder %s33, 1
    %p88 = por %p86, %p87
    %p89 = scmp.ne.s32.totalorder %s80, %s81
    %p90 = scmp.eq.s32.totalorder %s33, 0
    %p91 = por %p89, %p90
    %p92 = scmp.ne.s32.totalorder %s80, %s81
    %p93 = scmp.eq.s32.totalorder %s34, 1
    %p94 = por %p92, %p93
    %p96 = scmp.ne.s32.totalorder %s81, %s95
    %p97 = scmp.eq.s32.totalorder %s34, 0
    %p98 = por %p96, %p97
    %s100 = sadd.s32 %s99, 1
    %p103 = scmp.eq.s32.totalorder %s28, 1
    %p104 = scmp.ne.s32.totalorder %s99, %s101
    %p105 = scmp.eq.s32.totalorder %s28, 0
    %p106 = por %p104, %p105
    %p107 = scmp.ne.s32.totalorder %s99, %s101
    %p108 = scmp.eq.s32.totalorder %s33, 1
    %p109 = por %p107, %p108
    %p110 = scmp.ne.s32.totalorder %s101, %s102
    %p111 = scmp.eq.s32.totalorder %s33, 0
    %p112 = por %p110, %p111
    %p113 = scmp.ne.s32.totalorder %s101, %s102
    %p114 = scmp.eq.s32.totalorder %s34, 1
    %p115 = por %p113, %p114
    %p117 = scmp.ne.s32.totalorder %s102, %s116
    %p118 = scmp.eq.s32.totalorder %s34, 0
    %p119 = por %p117, %p118
    %s120 = ssub.s32 %s28, %s35
    %p121 = scmp.eq.s32.totalorder %s120, 0
    %s123 = sadd.s32 %s122, 1
    %s124 = scalar_select %p121, %s122, %s123
    %p127 = pneg %p121
    %p128 = scmp.eq.s32.totalorder %s28, 1
    %p129 = por %p127, %p128
    %p130 = scmp.ne.s32.totalorder %s122, %s125
    %p131 = scmp.eq.s32.totalorder %s28, 0
    %p132 = por %p130, %p131
    %p133 = scmp.ne.s32.totalorder %s122, %s125
    %p134 = scmp.eq.s32.totalorder %s33, 1
    %p135 = por %p133, %p134
    %p136 = scmp.ne.s32.totalorder %s125, %s126
    %p137 = scmp.eq.s32.totalorder %s33, 0
    %p138 = por %p136, %p137
    %p139 = scmp.ne.s32.totalorder %s125, %s126
    %p140 = scmp.eq.s32.totalorder %s34, 1
    %p141 = por %p139, %p140
    %p143 = scmp.ne.s32.totalorder %s126, %s142
    %p144 = scmp.eq.s32.totalorder %s34, 0
    %p145 = por %p143, %p144
    %s146 = ssub.s32 %s28, %s35
    %p147 = scmp.eq.s32.totalorder %s146, 0
    %s149 = sadd.s32 %s148, 1
    %s150 = scalar_select %p147, %s148, %s149
    %p153 = pneg %p147
    %p154 = scmp.eq.s32.totalorder %s28, 1
    %p155 = por %p153, %p154
    %p156 = scmp.ne.s32.totalorder %s148, %s151
    %p157 = scmp.eq.s32.totalorder %s28, 0
    %p158 = por %p156, %p157
    %p159 = scmp.ne.s32.totalorder %s148, %s151
    %p160 = scmp.eq.s32.totalorder %s33, 1
    %p161 = por %p159, %p160
    %p162 = scmp.ne.s32.totalorder %s151, %s152
    %p163 = scmp.eq.s32.totalorder %s33, 0
    %p164 = por %p162, %p163
    %p165 = scmp.ne.s32.totalorder %s151, %s152
    %p166 = scmp.eq.s32.totalorder %s34, 1
    %p167 = por %p165, %p166
    %p169 = scmp.ne.s32.totalorder %s152, %s168
    %p170 = scmp.eq.s32.totalorder %s34, 0
    %p171 = por %p169, %p170
    %s172 = ssub.s32 %s28, %s35
    %p173 = scmp.eq.s32.totalorder %s172, 0
    %s175 = sadd.s32 %s174, 1
    %s176 = scalar_select %p173, %s174, %s175
    %p179 = pneg %p173
    %p180 = scmp.eq.s32.totalorder %s28, 1
    %p181 = por %p179, %p180
    %p182 = scmp.ne.s32.totalorder %s174, %s177
    %p183 = scmp.eq.s32.totalorder %s28, 0
    %p184 = por %p182, %p183
    %p185 = scmp.ne.s32.totalorder %s174, %s177
    %p186 = scmp.eq.s32.totalorder %s33, 1
    %p187 = por %p185, %p186
    %p188 = scmp.ne.s32.totalorder %s177, %s178
    %p189 = scmp.eq.s32.totalorder %s33, 0
    %p190 = por %p188, %p189
    %p191 = scmp.ne.s32.totalorder %s177, %s178
    %p192 = scmp.eq.s32.totalorder %s34, 1
    %p193 = por %p191, %p192
    %p195 = scmp.ne.s32.totalorder %s178, %s194
    %p196 = scmp.eq.s32.totalorder %s34, 0
    %p197 = por %p195, %p196
    %s198 = ssub.s32 %s28, %s35
    %p199 = scmp.eq.s32.totalorder %s198, 0
    %s201 = sadd.s32 %s200, 1
    %s202 = scalar_select %p199, %s200, %s201
    %p205 = pneg %p199
    %p206 = scmp.eq.s32.totalorder %s28, 1
    %p207 = por %p205, %p206
    %p208 = scmp.ne.s32.totalorder %s200, %s203
    %p209 = scmp.eq.s32.totalorder %s28, 0
    %p210 = por %p208, %p209
    %p211 = scmp.ne.s32.totalorder %s200, %s203
    %p212 = scmp.eq.s32.totalorder %s33, 1
    %p213 = por %p211, %p212
    %p214 = scmp.ne.s32.totalorder %s203, %s204
    %p215 = scmp.eq.s32.totalorder %s33, 0
    %p216 = por %p214, %p215
    %p217 = scmp.ne.s32.totalorder %s203, %s204
    %p218 = scmp.eq.s32.totalorder %s34, 1
    %p219 = por %p217, %p218
    %p221 = scmp.ne.s32.totalorder %s204, %s220
    %p222 = scmp.eq.s32.totalorder %s34, 0
    %p223 = por %p221, %p222
    %s224 = ssub.s32 %s28, %s35
    %p225 = scmp.eq.s32.totalorder %s224, 0
    %s227 = sadd.s32 %s226, 1
    %s228 = scalar_select %p225, %s226, %s227
    %p231 = pneg %p225
    %p232 = scmp.eq.s32.totalorder %s28, 1
    %p233 = por %p231, %p232
    %p234 = scmp.ne.s32.totalorder %s226, %s229
    %p235 = scmp.eq.s32.totalorder %s28, 0
    %p236 = por %p234, %p235
    %p237 = scmp.ne.s32.totalorder %s226, %s229
    %p238 = scmp.eq.s32.totalorder %s33, 1
    %p239 = por %p237, %p238
    %p240 = scmp.ne.s32.totalorder %s229, %s230
    %p241 = scmp.eq.s32.totalorder %s33, 0
    %p242 = por %p240, %p241
    %p243 = scmp.ne.s32.totalorder %s229, %s230
    %p244 = scmp.eq.s32.totalorder %s34, 1
    %p245 = por %p243, %p244
    %p247 = scmp.ne.s32.totalorder %s230, %s246
    %p248 = scmp.eq.s32.totalorder %s34, 0
    %p249 = por %p247, %p248
    %s250 = ssub.s32 %s28, %s35
    %p251 = scmp.eq.s32.totalorder %s250, 0
    %s253 = sadd.s32 %s252, 1
    %s254 = scalar_select %p251, %s252, %s253
    %p257 = pneg %p251
    %p258 = scmp.eq.s32.totalorder %s28, 1
    %p259 = por %p257, %p258
    %p260 = scmp.ne.s32.totalorder %s252, %s255
    %p261 = scmp.eq.s32.totalorder %s28, 0
    %p262 = por %p260, %p261
    %p263 = scmp.ne.s32.totalorder %s252, %s255
    %p264 = scmp.eq.s32.totalorder %s33, 1
    %p265 = por %p263, %p264
    %p266 = scmp.ne.s32.totalorder %s255, %s256
    %p267 = scmp.eq.s32.totalorder %s33, 0
    %p268 = por %p266, %p267
    %p269 = scmp.ne.s32.totalorder %s255, %s256
    %p270 = scmp.eq.s32.totalorder %s34, 1
    %p271 = por %p269, %p270
    %p273 = scmp.ne.s32.totalorder %s256, %s272
    %p274 = scmp.eq.s32.totalorder %s34, 0
    %p275 = por %p273, %p274
    %s276 = ssub.s32 %s28, %s35
    %p277 = scmp.eq.s32.totalorder %s276, 0
    %s279 = sadd.s32 %s278, 1
    %s280 = scalar_select %p277, %s278, %s279
    %p283 = pneg %p277
    %p284 = scmp.eq.s32.totalorder %s28, 1
    %p285 = por %p283, %p284
    %p286 = scmp.ne.s32.totalorder %s278, %s281
    %p287 = scmp.eq.s32.totalorder %s28, 0
    %p288 = por %p286, %p287
    %p289 = scmp.ne.s32.totalorder %s278, %s281
    %p290 = scmp.eq.s32.totalorder %s33, 1
    %p291 = por %p289, %p290
    %p292 = scmp.ne.s32.totalorder %s281, %s282
    %p293 = scmp.eq.s32.totalorder %s33, 0
    %p294 = por %p292, %p293
    %p295 = scmp.ne.s32.totalorder %s281, %s282
    %p296 = scmp.eq.s32.totalorder %s34, 1
    %p297 = por %p295, %p296
    %p299 = scmp.ne.s32.totalorder %s282, %s298
    %p300 = scmp.eq.s32.totalorder %s34, 0
    %p301 = por %p299, %p300
    %s302 = ssub.s32 %s28, %s35
    %p303 = scmp.eq.s32.totalorder %s302, 0
    %s305 = sadd.s32 %s304, 1
    %s306 = scalar_select %p303, %s304, %s305
    %p309 = pneg %p303
    %p310 = scmp.eq.s32.totalorder %s28, 1
    %p311 = por %p309, %p310
    %p312 = scmp.ne.s32.totalorder %s304, %s307
    %p313 = scmp.eq.s32.totalorder %s28, 0
    %p314 = por %p312, %p313
    %p315 = scmp.ne.s32.totalorder %s304, %s307
    %p316 = scmp.eq.s32.totalorder %s33, 1
    %p317 = por %p315, %p316
    %p318 = scmp.ne.s32.totalorder %s307, %s308
    %p319 = scmp.eq.s32.totalorder %s33, 0
    %p320 = por %p318, %p319
    %p321 = scmp.ne.s32.totalorder %s307, %s308
    %p322 = scmp.eq.s32.totalorder %s34, 1
    %p323 = por %p321, %p322
    %p325 = scmp.ne.s32.totalorder %s308, %s324
    %p326 = scmp.eq.s32.totalorder %s34, 0
    %p327 = por %p325, %p326
    %s328 = ssub.s32 %s28, %s35
    %p329 = scmp.eq.s32.totalorder %s328, 0
    %s331 = sadd.s32 %s330, 1
    %s332 = scalar_select %p329, %s330, %s331
    %p335 = pneg %p329
    %p336 = scmp.eq.s32.totalorder %s28, 1
    %p337 = por %p335, %p336
    %p338 = scmp.ne.s32.totalorder %s330, %s333
    %p339 = scmp.eq.s32.totalorder %s28, 0
    %p340 = por %p338, %p339
    %p341 = scmp.ne.s32.totalorder %s330, %s333
    %p342 = scmp.eq.s32.totalorder %s33, 1
    %p343 = por %p341, %p342
    %p344 = scmp.ne.s32.totalorder %s333, %s334
    %p345 = scmp.eq.s32.totalorder %s33, 0
    %p346 = por %p344, %p345
    %p347 = scmp.ne.s32.totalorder %s333, %s334
    %p348 = scmp.eq.s32.totalorder %s34, 1
    %p349 = por %p347, %p348
    %p351 = scmp.ne.s32.totalorder %s334, %s350
    %p352 = scmp.eq.s32.totalorder %s34, 0
    %p353 = por %p351, %p352
    %s354 = ssub.s32 %s28, %s35
    %p355 = scmp.eq.s32.totalorder %s354, 0
    %s357 = sadd.s32 %s356, 1
    %s358 = scalar_select %p355, %s356, %s357
    %p361 = pneg %p355
    %p362 = scmp.eq.s32.totalorder %s28, 1
    %p363 = por %p361, %p362
    %p364 = scmp.ne.s32.totalorder %s356, %s359
    %p365 = scmp.eq.s32.totalorder %s28, 0
    %p366 = por %p364, %p365
    %p367 = scmp.ne.s32.totalorder %s356, %s359
    %p368 = scmp.eq.s32.totalorder %s33, 1
    %p369 = por %p367, %p368
    %p370 = scmp.ne.s32.totalorder %s359, %s360
    %p371 = scmp.eq.s32.totalorder %s33, 0
    %p372 = por %p370, %p371
    %p373 = scmp.ne.s32.totalorder %s359, %s360
    %p374 = scmp.eq.s32.totalorder %s34, 1
    %p375 = por %p373, %p374
    %p377 = scmp.ne.s32.totalorder %s360, %s376
    %p378 = scmp.eq.s32.totalorder %s34, 0
    %p379 = por %p377, %p378
    %s380 = ssub.s32 %s28, %s35
    %p381 = scmp.eq.s32.totalorder %s380, 0
    %s383 = sadd.s32 %s382, 1
    %s384 = scalar_select %p381, %s382, %s383
    %p387 = pneg %p381
    %p388 = scmp.eq.s32.totalorder %s28, 1
    %p389 = por %p387, %p388
    %p390 = scmp.ne.s32.totalorder %s382, %s385
    %p391 = scmp.eq.s32.totalorder %s28, 0
    %p392 = por %p390, %p391
    %p393 = scmp.ne.s32.totalorder %s382, %s385
    %p394 = scmp.eq.s32.totalorder %s33, 1
    %p395 = por %p393, %p394
    %p396 = scmp.ne.s32.totalorder %s385, %s386
    %p397 = scmp.eq.s32.totalorder %s33, 0
    %p398 = por %p396, %p397
    %p399 = scmp.ne.s32.totalorder %s385, %s386
    %p400 = scmp.eq.s32.totalorder %s34, 1
    %p401 = por %p399, %p400
    %p403 = scmp.ne.s32.totalorder %s386, %s402
    %p404 = scmp.eq.s32.totalorder %s34, 0
    %p405 = por %p403, %p404
    %s406 = ssub.s32 %s28, %s35
    %p407 = scmp.eq.s32.totalorder %s406, 0
    %s409 = sadd.s32 %s408, 1
    %s410 = scalar_select %p407, %s408, %s409
    %p413 = pneg %p407
    %p414 = scmp.eq.s32.totalorder %s28, 1
    %p415 = por %p413, %p414
    %p416 = scmp.ne.s32.totalorder %s408, %s411
    %p417 = scmp.eq.s32.totalorder %s28, 0
    %p418 = por %p416, %p417
    %p419 = scmp.ne.s32.totalorder %s408, %s411
    %p420 = scmp.eq.s32.totalorder %s33, 1
    %p421 = por %p419, %p420
    %p422 = scmp.ne.s32.totalorder %s411, %s412
    %p423 = scmp.eq.s32.totalorder %s33, 0
    %p424 = por %p422, %p423
    %p425 = scmp.ne.s32.totalorder %s411, %s412
    %p426 = scmp.eq.s32.totalorder %s34, 1
    %p427 = por %p425, %p426
    %p429 = scmp.ne.s32.totalorder %s412, %s428
    %p430 = scmp.eq.s32.totalorder %s34, 0
    %p431 = por %p429, %p430
    %s433 = sadd.s32 %s432, 1
    %p436 = scmp.eq.s32.totalorder %s28, 1
    %p437 = scmp.ne.s32.totalorder %s432, %s434
    %p438 = scmp.eq.s32.totalorder %s28, 0
    %p439 = por %p437, %p438
    %p440 = scmp.ne.s32.totalorder %s432, %s434
    %p441 = scmp.eq.s32.totalorder %s33, 1
    %p442 = por %p440, %p441
    %p443 = scmp.ne.s32.totalorder %s434, %s435
    %p444 = scmp.eq.s32.totalorder %s33, 0
    %p445 = por %p443, %p444
    %p446 = scmp.ne.s32.totalorder %s434, %s435
    %p447 = scmp.eq.s32.totalorder %s34, 1
    %p448 = por %p446, %p447
    %p450 = scmp.ne.s32.totalorder %s435, %s449
    %p451 = scmp.eq.s32.totalorder %s34, 0
    %p452 = por %p450, %p451
    %s454 = sadd.s32 %s453, 1
    %p457 = scmp.eq.s32.totalorder %s28, 1
    %p458 = scmp.ne.s32.totalorder %s453, %s455
    %p459 = scmp.eq.s32.totalorder %s28, 0
    %p460 = por %p458, %p459
    %p461 = scmp.ne.s32.totalorder %s453, %s455
    %p462 = scmp.eq.s32.totalorder %s33, 1
    %p463 = por %p461, %p462
    %p464 = scmp.ne.s32.totalorder %s455, %s456
    %p465 = scmp.eq.s32.totalorder %s33, 0
    %p466 = por %p464, %p465
    %p467 = scmp.ne.s32.totalorder %s455, %s456
    %p468 = scmp.eq.s32.totalorder %s34, 1
    %p469 = por %p467, %p468
    %p471 = scmp.ne.s32.totalorder %s456, %s470
    %p472 = scmp.eq.s32.totalorder %s34, 0
    %p473 = por %p471, %p472
    %s475 = sadd.s32 %s474, 1
    %p478 = scmp.eq.s32.totalorder %s28, 1
    %p479 = scmp.ne.s32.totalorder %s474, %s476
    %p480 = scmp.eq.s32.totalorder %s28, 0
    %p481 = por %p479, %p480
    %p482 = scmp.ne.s32.totalorder %s474, %s476
    %p483 = scmp.eq.s32.totalorder %s33, 1
    %p484 = por %p482, %p483
    %p485 = scmp.ne.s32.totalorder %s476, %s477
    %p486 = scmp.eq.s32.totalorder %s33, 0
    %p487 = por %p485, %p486
    %p488 = scmp.ne.s32.totalorder %s476, %s477
    %p489 = scmp.eq.s32.totalorder %s34, 1
    %p490 = por %p488, %p489
    %p492 = scmp.ne.s32.totalorder %s477, %s491
    %p493 = scmp.eq.s32.totalorder %s34, 0
    %p494 = por %p492, %p493
    %s496 = sadd.s32 %s495, 1
    %p499 = scmp.eq.s32.totalorder %s28, 1
    %p500 = scmp.ne.s32.totalorder %s495, %s497
    %p501 = scmp.eq.s32.totalorder %s28, 0
    %p502 = por %p500, %p501
    %p503 = scmp.ne.s32.totalorder %s495, %s497
    %p504 = scmp.eq.s32.totalorder %s33, 1
    %p505 = por %p503, %p504
    %p506 = scmp.ne.s32.totalorder %s497, %s498
    %p507 = scmp.eq.s32.totalorder %s33, 0
    %p508 = por %p506, %p507
    %p509 = scmp.ne.s32.totalorder %s497, %s498
    %p510 = scmp.eq.s32.totalorder %s34, 1
    %p511 = por %p509, %p510
    %p513 = scmp.ne.s32.totalorder %s498, %s512
    %p514 = scmp.eq.s32.totalorder %s34, 0
    %p515 = por %p513, %p514
    %s517 = sadd.s32 %s516, 1
    %p520 = scmp.eq.s32.totalorder %s28, 1
    %p521 = scmp.ne.s32.totalorder %s516, %s518
    %p522 = scmp.eq.s32.totalorder %s28, 0
    %p523 = por %p521, %p522
    %p524 = scmp.ne.s32.totalorder %s516, %s518
    %p525 = scmp.eq.s32.totalorder %s33, 1
    %p526 = por %p524, %p525
    %p527 = scmp.ne.s32.totalorder %s518, %s519
    %p528 = scmp.eq.s32.totalorder %s33, 0
    %p529 = por %p527, %p528
    %p530 = scmp.ne.s32.totalorder %s518, %s519
    %p531 = scmp.eq.s32.totalorder %s34, 1
    %p532 = por %p530, %p531
    %p534 = scmp.ne.s32.totalorder %s519, %s533
    %p535 = scmp.eq.s32.totalorder %s34, 0
    %p536 = por %p534, %p535
    %p537 = scmp.le.s32.totalorder 1, %s28
    %p538 = scmp.lt.s32.totalorder %s28, 3
    %p539 = pnand %p537, %p538
    %p540 = pneg %p539
    // Predicated region
    $region9: #{fine_bert_forward.1} parent=5 // pred_check
      _
    $region10: #{fine_bert_forward.1} parent=5 // pred_check_branch
      %542 = sbr.rel (%p539) target = $region12
    $region11: #{fine_bert_forward.1} parent=5 // pred_region
      %s543 = ssub.s32 %s28, 1
      // Predicated region
      $region13: #{fine_bert_forward.1} parent=11 // pred_check
        %p544 = pneg %p49
      $region14: #{fine_bert_forward.1} parent=11 // pred_check_branch
        %546 = sbr.rel (%p544) target = $region16
      $region15: #{fine_bert_forward.1} parent=11 // pred_region
        _
      $region16: #{fine_bert_forward.1} parent=11 // pred_fallthru
        _
      // Predicated region
      $region17: #{fine_bert_forward.1} parent=11 // pred_check
        %p547 = pneg %p70
      $region18: #{fine_bert_forward.1} parent=11 // pred_check_branch
        %549 = sbr.rel (%p547) target = $region20
      $region19: #{fine_bert_forward.1} parent=11 // pred_region
        _
      $region20: #{fine_bert_forward.1} parent=11 // pred_fallthru
        _
      // Predicated region
      $region21: #{fine_bert_forward.1} parent=11 // pred_check
        %p550 = pneg %p91
      $region22: #{fine_bert_forward.1} parent=11 // pred_check_branch
        %552 = sbr.rel (%p550) target = $region24
      $region23: #{fine_bert_forward.1} parent=11 // pred_region
        _
      $region24: #{fine_bert_forward.1} parent=11 // pred_fallthru
        _
      // Predicated region
      $region25: #{fine_bert_forward.1} parent=11 // pred_check
        %p553 = pneg %p112
      $region26: #{fine_bert_forward.1} parent=11 // pred_check_branch
        %555 = sbr.rel (%p553) target = $region28
      $region27: #{fine_bert_forward.1} parent=11 // pred_region
        _
      $region28: #{fine_bert_forward.1} parent=11 // pred_fallthru
        _
      // Predicated region
      $region29: #{fine_bert_forward.1} parent=11 // pred_check
        %p556 = pneg %p445
      $region30: #{fine_bert_forward.1} parent=11 // pred_check_branch
        %558 = sbr.rel (%p556) target = $region32
      $region31: #{fine_bert_forward.1} parent=11 // pred_region
        _
      $region32: #{fine_bert_forward.1} parent=11 // pred_fallthru
        _
      // Predicated region
      $region33: #{fine_bert_forward.1} parent=11 // pred_check
        %p559 = pneg %p466
      $region34: #{fine_bert_forward.1} parent=11 // pred_check_branch
        %561 = sbr.rel (%p559) target = $region36
      $region35: #{fine_bert_forward.1} parent=11 // pred_region
        _
      $region36: #{fine_bert_forward.1} parent=11 // pred_fallthru
        _
      // Predicated region
      $region37: #{fine_bert_forward.1} parent=11 // pred_check
        %p562 = pneg %p487
      $region38: #{fine_bert_forward.1} parent=11 // pred_check_branch
        %564 = sbr.rel (%p562) target = $region40
      $region39: #{fine_bert_forward.1} parent=11 // pred_region
        _
      $region40: #{fine_bert_forward.1} parent=11 // pred_fallthru
        _
      // Predicated region
      $region41: #{fine_bert_forward.1} parent=11 // pred_check
        %p565 = pneg %p508
      $region42: #{fine_bert_forward.1} parent=11 // pred_check_branch
        %567 = sbr.rel (%p565) target = $region44
      $region43: #{fine_bert_forward.1} parent=11 // pred_region
        _
      $region44: #{fine_bert_forward.1} parent=11 // pred_fallthru
        _
    $region12: #{fine_bert_forward.1} parent=5 // pred_fallthru
      _
    %p568 = scmp.lt.s32.totalorder %s28, 2
    // Predicated region
    $region45: #{fine_bert_forward.1} parent=5 // pred_check
      %p569 = pneg %p568
    $region46: #{fine_bert_forward.1} parent=5 // pred_check_branch
      %571 = sbr.rel (%p569) target = $region48
    $region47: #{fine_bert_forward.1} parent=5 // pred_region
      // Predicated region
      $region49: #{fine_bert_forward.1} parent=47 // pred_check
        %p572 = pneg %p132
      $region50: #{fine_bert_forward.1} parent=47 // pred_check_branch
        %574 = sbr.rel (%p572) target = $region52
      $region51: #{fine_bert_forward.1} parent=47 // pred_region
        %p575 = scmp.lt.s32.totalorder %s28, 1
        %s576 = scalar_select %p575, %s28, 1
        %s577 = smul.addr %s576, 4
        %s578 = smul.addr %s577, 4
        %s579 = scalar_lea.vmem %s4, %s578
      $region52: #{fine_bert_forward.1} parent=47 // pred_fallthru
        _
      // Predicated region
      $region53: #{fine_bert_forward.1} parent=47 // pred_check
        %p580 = pneg %p158
      $region54: #{fine_bert_forward.1} parent=47 // pred_check_branch
        %582 = sbr.rel (%p580) target = $region56
      $region55: #{fine_bert_forward.1} parent=47 // pred_region
        %p583 = scmp.lt.s32.totalorder %s28, 1
        %s584 = scalar_select %p583, %s28, 1
        %s585 = scalar_lea.vmem %s5, %s584
      $region56: #{fine_bert_forward.1} parent=47 // pred_fallthru
        _
      // Predicated region
      $region57: #{fine_bert_forward.1} parent=47 // pred_check
        %p586 = pneg %p184
      $region58: #{fine_bert_forward.1} parent=47 // pred_check_branch
        %588 = sbr.rel (%p586) target = $region60
      $region59: #{fine_bert_forward.1} parent=47 // pred_region
        %p589 = scmp.lt.s32.totalorder %s28, 1
        %s590 = scalar_select %p589, %s28, 1
        %s591 = smul.addr %s590, 4
        %s592 = smul.addr %s591, 4
        %s593 = scalar_lea.vmem %s6, %s592
      $region60: #{fine_bert_forward.1} parent=47 // pred_fallthru
        _
      // Predicated region
      $region61: #{fine_bert_forward.1} parent=47 // pred_check
        %p594 = pneg %p210
      $region62: #{fine_bert_forward.1} parent=47 // pred_check_branch
        %596 = sbr.rel (%p594) target = $region64
      $region63: #{fine_bert_forward.1} parent=47 // pred_region
        %p597 = scmp.lt.s32.totalorder %s28, 1
        %s598 = scalar_select %p597, %s28, 1
        %s599 = scalar_lea.vmem %s7, %s598
      $region64: #{fine_bert_forward.1} parent=47 // pred_fallthru
        _
      // Predicated region
      $region65: #{fine_bert_forward.1} parent=47 // pred_check
        %p600 = pneg %p236
      $region66: #{fine_bert_forward.1} parent=47 // pred_check_branch
        %602 = sbr.rel (%p600) target = $region68
      $region67: #{fine_bert_forward.1} parent=47 // pred_region
        %p603 = scmp.lt.s32.totalorder %s28, 1
        %s604 = scalar_select %p603, %s28, 1
        %s605 = scalar_lea.vmem %s8, %s604
      $region68: #{fine_bert_forward.1} parent=47 // pred_fallthru
        _
      // Predicated region
      $region69: #{fine_bert_forward.1} parent=47 // pred_check
        %p606 = pneg %p262
      $region70: #{fine_bert_forward.1} parent=47 // pred_check_branch
        %608 = sbr.rel (%p606) target = $region72
      $region71: #{fine_bert_forward.1} parent=47 // pred_region
        %p609 = scmp.lt.s32.totalorder %s28, 1
        %s610 = scalar_select %p609, %s28, 1
        %s611 = scalar_lea.vmem %s9, %s610
      $region72: #{fine_bert_forward.1} parent=47 // pred_fallthru
        _
      // Predicated region
      $region73: #{fine_bert_forward.1} parent=47 // pred_check
        %p612 = pneg %p288
      $region74: #{fine_bert_forward.1} parent=47 // pred_check_branch
        %614 = sbr.rel (%p612) target = $region76
      $region75: #{fine_bert_forward.1} parent=47 // pred_region
        %p615 = scmp.lt.s32.totalorder %s28, 1
        %s616 = scalar_select %p615, %s28, 1
        %s617 = smul.addr %s616, 4
        %s618 = smul.addr %s617, 4
        %s619 = scalar_lea.vmem %s10, %s618
      $region76: #{fine_bert_forward.1} parent=47 // pred_fallthru
        _
      // Predicated region
      $region77: #{fine_bert_forward.1} parent=47 // pred_check
        %p620 = pneg %p314
      $region78: #{fine_bert_forward.1} parent=47 // pred_check_branch
        %622 = sbr.rel (%p620) target = $region80
      $region79: #{fine_bert_forward.1} parent=47 // pred_region
        %p623 = scmp.lt.s32.totalorder %s28, 1
        %s624 = scalar_select %p623, %s28, 1
        %s625 = scalar_lea.vmem %s11, %s624
      $region80: #{fine_bert_forward.1} parent=47 // pred_fallthru
        _
      // Predicated region
      $region81: #{fine_bert_forward.1} parent=47 // pred_check
        %p626 = pneg %p340
      $region82: #{fine_bert_forward.1} parent=47 // pred_check_branch
        %628 = sbr.rel (%p626) target = $region84
      $region83: #{fine_bert_forward.1} parent=47 // pred_region
        %p629 = scmp.lt.s32.totalorder %s28, 1
        %s630 = scalar_select %p629, %s28, 1
        %s631 = smul.addr %s630, 8
        %s632 = smul.addr %s631, 4
        %s633 = scalar_lea.vmem %s12, %s632
      $region84: #{fine_bert_forward.1} parent=47 // pred_fallthru
        _
      // Predicated region
      $region85: #{fine_bert_forward.1} parent=47 // pred_check
        %p634 = pneg %p366
      $region86: #{fine_bert_forward.1} parent=47 // pred_check_branch
        %636 = sbr.rel (%p634) target = $region88
      $region87: #{fine_bert_forward.1} parent=47 // pred_region
        %p637 = scmp.lt.s32.totalorder %s28, 1
        %s638 = scalar_select %p637, %s28, 1
        %s639 = scalar_lea.vmem %s13, %s638
      $region88: #{fine_bert_forward.1} parent=47 // pred_fallthru
        _
      // Predicated region
      $region89: #{fine_bert_forward.1} parent=47 // pred_check
        %p640 = pneg %p392
      $region90: #{fine_bert_forward.1} parent=47 // pred_check_branch
        %642 = sbr.rel (%p640) target = $region92
      $region91: #{fine_bert_forward.1} parent=47 // pred_region
        %p643 = scmp.lt.s32.totalorder %s28, 1
        %s644 = scalar_select %p643, %s28, 1
        %s645 = scalar_lea.vmem %s14, %s644
      $region92: #{fine_bert_forward.1} parent=47 // pred_fallthru
        _
      // Predicated region
      $region93: #{fine_bert_forward.1} parent=47 // pred_check
        %p646 = pneg %p418
      $region94: #{fine_bert_forward.1} parent=47 // pred_check_branch
        %648 = sbr.rel (%p646) target = $region96
      $region95: #{fine_bert_forward.1} parent=47 // pred_region
        %p649 = scmp.lt.s32.totalorder %s28, 1
        %s650 = scalar_select %p649, %s28, 1
        %s651 = scalar_lea.vmem %s15, %s650
      $region96: #{fine_bert_forward.1} parent=47 // pred_fallthru
        _
    $region48: #{fine_bert_forward.1} parent=5 // pred_fallthru
      _
    %p652 = scmp.le.s32.totalorder 1, %s28
    %p653 = scmp.lt.s32.totalorder %s28, 3
    %p654 = pnand %p652, %p653
    %p655 = pneg %p654
    // Predicated region
    $region97: #{fine_bert_forward.1} parent=5 // pred_check
      _
    $region98: #{fine_bert_forward.1} parent=5 // pred_check_branch
      %657 = sbr.rel (%p654) target = $region100
    $region99: #{fine_bert_forward.1} parent=5 // pred_region
      %s658 = ssub.s32 %s28, 1
      %p659 = pneg %p49
      %p660 = pneg %p46
      %p661 = pneg %p70
      %p662 = pneg %p67
      %p663 = pneg %p91
      %p664 = pneg %p88
      %p665 = pneg %p112
      %p666 = pneg %p109
      %p667 = scmp.lt.s32.totalorder %s33, 1
      %s668 = scalar_select %p667, %s33, 1
      %s669 = smul.addr %s668, 4
      %s670 = smul.addr %s669, 4
      %s671 = scalar_lea.vmem %s4, %s670
      %p672 = pneg %p138
      %p673 = pneg %p135
      %p674 = scmp.lt.s32.totalorder %s33, 1
      %s675 = scalar_select %p674, %s33, 1
      %s676 = scalar_lea.vmem %s5, %s675
      %p677 = pneg %p164
      %p678 = pneg %p161
      %p679 = scmp.lt.s32.totalorder %s33, 1
      %s680 = scalar_select %p679, %s33, 1
      %s681 = smul.addr %s680, 4
      %s682 = smul.addr %s681, 4
      %s683 = scalar_lea.vmem %s6, %s682
      %p684 = pneg %p190
      %p685 = pneg %p187
      %p686 = scmp.lt.s32.totalorder %s33, 1
      %s687 = scalar_select %p686, %s33, 1
      %s688 = scalar_lea.vmem %s7, %s687
      %p689 = pneg %p216
      %p690 = pneg %p213
      %p691 = scmp.lt.s32.totalorder %s33, 1
      %s692 = scalar_select %p691, %s33, 1
      %s693 = scalar_lea.vmem %s8, %s692
      %p694 = pneg %p242
      %p695 = pneg %p239
      %p696 = scmp.lt.s32.totalorder %s33, 1
      %s697 = scalar_select %p696, %s33, 1
      %s698 = scalar_lea.vmem %s9, %s697
      %p699 = pneg %p268
      %p700 = pneg %p265
      %p701 = scmp.lt.s32.totalorder %s33, 1
      %s702 = scalar_select %p701, %s33, 1
      %s703 = smul.addr %s702, 4
      %s704 = smul.addr %s703, 4
      %s705 = scalar_lea.vmem %s10, %s704
      %p706 = pneg %p294
      %p707 = pneg %p291
      %p708 = scmp.lt.s32.totalorder %s33, 1
      %s709 = scalar_select %p708, %s33, 1
      %s710 = scalar_lea.vmem %s11, %s709
      %p711 = pneg %p320
      %p712 = pneg %p317
      %p713 = scmp.lt.s32.totalorder %s33, 1
      %s714 = scalar_select %p713, %s33, 1
      %s715 = smul.addr %s714, 8
      %s716 = smul.addr %s715, 4
      %s717 = scalar_lea.vmem %s12, %s716
      %p718 = pneg %p346
      %p719 = pneg %p343
      %p720 = scmp.lt.s32.totalorder %s33, 1
      %s721 = scalar_select %p720, %s33, 1
      %s722 = scalar_lea.vmem %s13, %s721
      %p723 = pneg %p372
      %p724 = pneg %p369
      %p725 = scmp.lt.s32.totalorder %s33, 1
      %s726 = scalar_select %p725, %s33, 1
      %s727 = scalar_lea.vmem %s14, %s726
      %p728 = pneg %p398
      %p729 = pneg %p395
      %p730 = scmp.lt.s32.totalorder %s33, 1
      %s731 = scalar_select %p730, %s33, 1
      %s732 = scalar_lea.vmem %s15, %s731
      %p733 = pneg %p424
      %p734 = pneg %p421
      %p735 = pneg %p445
      %p736 = pneg %p442
      %p737 = pneg %p466
      %p738 = pneg %p463
      %p739 = pneg %p487
      %p740 = pneg %p484
      %p741 = pneg %p508
      %p742 = pneg %p505
      %p743 = pneg %p529
      %p744 = pneg %p526
      %p745 = scmp.lt.s32.totalorder %s33, 1
      %s746 = scalar_select %p745, %s33, 1
      %s747 = smul.addr %s746, 4
      %s748 = smul.addr %s747, 4
      %s749 = scalar_lea.vmem %s4, %s748
      %p750 = scmp.lt.s32.totalorder %s33, 1
      %s751 = scalar_select %p750, %s33, 1
      %s752 = scalar_lea.vmem %s5, %s751
      %p753 = scmp.lt.s32.totalorder %s33, 1
      %s754 = scalar_select %p753, %s33, 1
      %s755 = smul.addr %s754, 4
      %s756 = smul.addr %s755, 4
      %s757 = scalar_lea.vmem %s6, %s756
      %p758 = scmp.lt.s32.totalorder %s33, 1
      %s759 = scalar_select %p758, %s33, 1
      %s760 = scalar_lea.vmem %s7, %s759
      %p761 = scmp.lt.s32.totalorder %s33, 1
      %s762 = scalar_select %p761, %s33, 1
      %s763 = scalar_lea.vmem %s8, %s762
      %p764 = scmp.lt.s32.totalorder %s33, 1
      %s765 = scalar_select %p764, %s33, 1
      %s766 = scalar_lea.vmem %s9, %s765
      %p767 = scmp.lt.s32.totalorder %s33, 1
      %s768 = scalar_select %p767, %s33, 1
      %s769 = smul.addr %s768, 4
      %s770 = smul.addr %s769, 4
      %s771 = scalar_lea.vmem %s10, %s770
      %p772 = scmp.lt.s32.totalorder %s33, 1
      %s773 = scalar_select %p772, %s33, 1
      %s774 = scalar_lea.vmem %s11, %s773
      %p775 = scmp.lt.s32.totalorder %s33, 1
      %s776 = scalar_select %p775, %s33, 1
      %s777 = smul.addr %s776, 8
      %s778 = smul.addr %s777, 4
      %s779 = scalar_lea.vmem %s12, %s778
      %p780 = scmp.lt.s32.totalorder %s33, 1
      %s781 = scalar_select %p780, %s33, 1
      %s782 = scalar_lea.vmem %s13, %s781
      %p783 = scmp.lt.s32.totalorder %s33, 1
      %s784 = scalar_select %p783, %s33, 1
      %s785 = scalar_lea.vmem %s14, %s784
      %p786 = scmp.lt.s32.totalorder %s33, 1
      %s787 = scalar_select %p786, %s33, 1
      %s788 = scalar_lea.vmem %s15, %s787
      %p790 = scmp.eq.s32.totalorder %s33, 0
      // Predicated region
      $region101: #{fine_bert_forward.1} parent=99 // pred_check
        %p791 = pneg %p790
      $region102: #{fine_bert_forward.1} parent=99 // pred_check_branch
        %793 = sbr.rel (%p791) target = $region104
      $region103: #{fine_bert_forward.1} parent=99 // pred_region
        %v794 = vld [vmem:[%s0] sm:$0xff]
        %v795 = vld [vmem:[%s0 + $0x8] sm:$0xff]
        %v796 = vld [vmem:[%s2] sm:$0x1]
        %v797 = vld [vmem:[%s3] sm:$0x1]
        %vm798 = vcmask 261120
        %v799 = vsel %vm798, %v794, 0.0
        %800 = vadd.xlane.f32.xlu0 %v799
        %v801 = vpop.xlane.xlu0 %800
        %v802 = vsel %vm798, %v795, 0.0
        %803 = vadd.xlane.f32.xlu0 %v802
        %v804 = vpop.xlane.xlu0 %803
        %v805 = vrcp.pop 32.0
        %v806 = vmul.f32 %v801, %v805
        %v807 = vmul.f32 %v804, %v805
        %v808 = vsub.f32 %v794, %v806
        %v809 = vsub.f32 %v795, %v807
        %v810 = vmul.f32 %v808, %v808
        %v811 = vmul.f32 %v809, %v809
        %v812 = vsel %vm798, %v810, 0.0
        %813 = vadd.xlane.f32.xlu0 %v812
        %v814 = vpop.xlane.xlu0 %813
        %v815 = vsel %vm798, %v811, 0.0
        %816 = vadd.xlane.f32.xlu0 %v815
        %v817 = vpop.xlane.xlu0 %816
        %v818 = vmul.f32 %v814, %v805
        %v819 = vmul.f32 %v817, %v805
        %v820 = vadd.f32 %v818, 1e-12
        %v821 = vadd.f32 %v819, 1e-12
        %v822 = vrsqrt.pop %v820
        %v823 = vrsqrt.pop %v821
        %v824 = vmul.f32 %v808, %v822
        %v825 = vmul.f32 %v809, %v823
        %v827 = vlaneseq
        %v828 = vshrl.u32 %v827, 7
        %v829 = vsub.s32 0, %v828
        %v830 = vrot.slane %v796, %v829
        %v832 = vmul.f32 %v824, %v830
        %v833 = vmul.f32 %v825, %v830
        %v835 = vlaneseq
        %v836 = vshrl.u32 %v835, 7
        %v837 = vsub.s32 0, %v836
        %v838 = vrot.slane %v797, %v837
        %v840 = vadd.f32 %v832, %v838
        %v841 = vadd.f32 %v833, %v838
        %842 = vst.msk [vmem:[#allocation2] sm:$0xff] %vm798, %v840
        %843 = vst.msk [vmem:[#allocation2 + $0x8] sm:$0xff] %vm798, %v841
      $region104: #{fine_bert_forward.1} parent=99 // pred_fallthru
        _
      %v844 = vld [vmem:[#allocation2] sm:$0xff]
      %v845 = vld [vmem:[#allocation2 + $0x8] sm:$0xff]
      %v846 = vld [vmem:[%s1] sm:$0xff]
      %v847 = vld [vmem:[%s1 + $0x8] sm:$0xff]
      %v848 = vpack.c.bf16 %v845, %v844
      %v849 = vld [vmem:[%s749] sm:$0xf]
      %v850 = vld [vmem:[%s749 + $0x4] sm:$0xf]
      %v851 = vld [vmem:[%s749 + $0x8] sm:$0xf]
      %v852 = vld [vmem:[%s749 + $0xc] sm:$0xf]
      %v853 = vld [vmem:[%s752] sm:$0x1]
      %v855 = vlaneseq
      %v856 = vshrl.u32 %v855, 7
      %v857 = vsub.s32 0, %v856
      %v858 = vrot.slane %v853, %v857
      %v864 = vunpack.c.l.b16 %v849
      %v865 = vunpack.c.l.b16 %v850
      %v866 = vunpack.c.l.b16 %v851
      %v867 = vunpack.c.l.b16 %v852
      %v868 = vpack.c.b16 %v865, %v864
      %v869 = vpack.c.b16 %v867, %v866
      %vm872 = vcmask 261120
      %v874 = vsel %vm872, %v848, 0
      %876 = vmatprep.subr.bf16.mxu0 0
      %877 = vmatpush1.bf16.msra.mxu0 0
      %878 = vmatprep.subr.bf16.mxu0 0
      %879 = vmatpush1.bf16.msra.mxu0 0
      %880 = vmatprep.subr.bf16.mxu0 0
      %881 = vmatpush1.bf16.msra.mxu0 0
      %882 = vmatprep.subr.bf16.mxu0 0
      %883 = vmatpush1.bf16.msra.mxu0 0
      %884 = vmatprep.subr.bf16.mxu0 0
      %885 = vmatpush1.bf16.msra.mxu0 0
      %886 = vmatprep.subr.bf16.mxu0 0
      %887 = vmatpush1.bf16.msra.mxu0 0
      %888 = vmatprep.subr.bf16.mxu0 0
      %889 = vmatpush1.bf16.msra.mxu0 %v869
      %890 = vmatprep.subr.bf16.mxu0 0
      %891 = vmatpush1.bf16.msra.mxu0 %v868
      %892 = vmatprep.subr.bf16.mxu0 0
      %893 = vmatpush2.bf16.msra.mxu0 0
      %894 = vmatprep.subr.bf16.mxu0 0
      %895 = vmatpush2.bf16.msra.mxu0 0
      %896 = vmatprep.subr.bf16.mxu0 0
      %897 = vmatpush2.bf16.msra.mxu0 0
      %898 = vmatprep.subr.bf16.mxu0 0
      %899 = vmatpush2.bf16.msra.mxu0 0
      %900 = vmatprep.subr.bf16.mxu0 0
      %901 = vmatpush2.bf16.msra.mxu0 0
      %902 = vmatprep.subr.bf16.mxu0 0
      %903 = vmatpush2.bf16.msra.mxu0 0
      %904 = vmatprep.subr.bf16.mxu0 0
      %905 = vmatpush2.bf16.msra.mxu0 0
      %906 = vmatprep.subr.bf16.mxu0 0
      %907 = vmatpush2.bf16.msra.mxu0 0
      %908 = vmatprep.mubr.bf16.mxu0 0
      %909 = vmatmul.mubr.bf16.gmra.mxu0 %v874
      %v910 = vpop.f32.mrf.mxu0
      %v911 = vadd.f32 %v858, %v910
      %v912 = vpop.f32.mrf.mxu0
      %v913 = vpop.f32.mrf.mxu0
      %v914 = vadd.f32 %v858, %v913
      %v915 = vpop.f32.mrf.mxu0
      %916 = vdwg.mxu0
      %v917 = vld [vmem:[%s757] sm:$0xf]
      %v918 = vld [vmem:[%s757 + $0x4] sm:$0xf]
      %v919 = vld [vmem:[%s757 + $0x8] sm:$0xf]
      %v920 = vld [vmem:[%s757 + $0xc] sm:$0xf]
      %v921 = vpack.c.bf16 %v914, %v911
      %923 = vrot.lane.b32.xlu0 %v921, 96
      %v924 = vpop.permute.xlu0 %923
      %vm925 = vcmask 130048
      %v927 = vsel %vm925, %v921, 0
      %v930 = vsel %vm925, %v924, 0
      %932 = vmatprep.subr.bf16.mxu0 0
      %933 = vmatpush1.bf16.xpose.msra.mxu0 0
      %934 = vmatprep.subr.bf16.mxu0 0
      %935 = vmatpush1.bf16.xpose.msra.mxu0 0
      %936 = vmatprep.subr.bf16.mxu0 0
      %937 = vmatpush1.bf16.xpose.msra.mxu0 0
      %938 = vmatprep.subr.bf16.mxu0 0
      %939 = vmatpush1.bf16.xpose.msra.mxu0 0
      %940 = vmatprep.subr.bf16.mxu0 0
      %941 = vmatpush1.bf16.xpose.msra.mxu0 0
      %942 = vmatprep.subr.bf16.mxu0 0
      %943 = vmatpush1.bf16.xpose.msra.mxu0 0
      %944 = vmatprep.subr.bf16.mxu0 0
      %945 = vmatpush1.bf16.xpose.msra.mxu0 0
      %946 = vmatprep.subr.bf16.mxu0 0
      %947 = vmatpush1.bf16.xpose.msra.mxu0 %v930
      %948 = vmatprep.subr.bf16.mxu0 0
      %949 = vmatpush2.bf16.xpose.msra.mxu0 0
      %950 = vmatprep.subr.bf16.mxu0 0
      %951 = vmatpush2.bf16.xpose.msra.mxu0 0
      %952 = vmatprep.subr.bf16.mxu0 0
      %953 = vmatpush2.bf16.xpose.msra.mxu0 0
      %954 = vmatprep.subr.bf16.mxu0 0
      %955 = vmatpush2.bf16.xpose.msra.mxu0 0
      %956 = vmatprep.subr.bf16.mxu0 0
      %957 = vmatpush2.bf16.xpose.msra.mxu0 0
      %958 = vmatprep.subr.bf16.mxu0 0
      %959 = vmatpush2.bf16.xpose.msra.mxu0 0
      %960 = vmatprep.subr.bf16.mxu0 0
      %961 = vmatpush2.bf16.xpose.msra.mxu0 0
      %962 = vmatprep.subr.bf16.mxu0 0
      %963 = vmatpush2.bf16.xpose.msra.mxu0 0
      %964 = vmatprep.mubr.bf16.mxu0 0
      %965 = vmatmul.mubr.bf16.gmra.mxu0 %v927
      %v966 = vpop.f32.mrf.mxu0
      %v967 = vadd.f32 %v846, %v966
      %v968 = vpop.f32.mrf.mxu0
      %v969 = vpop.f32.mrf.mxu0
      %v970 = vadd.f32 %v847, %v969
      %v971 = vpop.f32.mrf.mxu0
      %972 = vdwg.mxu0
      %v973 = vsel %vm925, %v967, -inf
      %974 = vmax.xlane.f32.xlu0 %v973
      %v975 = vpop.xlane.xlu0 %974
      %v976 = vsel %vm925, %v970, -inf
      %977 = vmax.xlane.f32.xlu0 %v976
      %v978 = vpop.xlane.xlu0 %977
      %v979 = vsub.f32 %v967, %v975
      %v980 = vsub.f32 %v970, %v978
      %v981 = vmul.f32 %v979, 1.442695
      %v982 = vpow.pop %v981
      %v983 = vmul.f32 %v980, 1.442695
      %v984 = vpow.pop %v983
      %v985 = vsel %vm925, %v982, 0.0
      %986 = vadd.xlane.f32.xlu0 %v985
      %v987 = vpop.xlane.xlu0 %986
      %v988 = vsel %vm925, %v984, 0.0
      %989 = vadd.xlane.f32.xlu0 %v988
      %v990 = vpop.xlane.xlu0 %989
      %v991 = vrcp.pop %v987
      %v992 = vrcp.pop %v990
      %v993 = vmul.f32 %v982, %v991
      %v994 = vmul.f32 %v984, %v992
      %v995 = vpack.c.bf16 %v994, %v993
      %996 = vrot.lane.b32.xlu0 %v921, 64
      %v997 = vpop.permute.xlu0 %996
      %v1000 = vsel %vm925, %v995, 0
      %1002 = vmatprep.subr.bf16.mxu0 0
      %1003 = vmatpush1.bf16.msra.mxu0 0
      %1004 = vmatprep.subr.bf16.mxu0 0
      %1005 = vmatpush1.bf16.msra.mxu0 0
      %1006 = vmatprep.subr.bf16.mxu0 0
      %1007 = vmatpush1.bf16.msra.mxu0 0
      %1008 = vmatprep.subr.bf16.mxu0 0
      %1009 = vmatpush1.bf16.msra.mxu0 0
      %1010 = vmatprep.subr.bf16.mxu0 0
      %1011 = vmatpush1.bf16.msra.mxu0 0
      %1012 = vmatprep.subr.bf16.mxu0 0
      %1013 = vmatpush1.bf16.msra.mxu0 0
      %1014 = vmatprep.subr.bf16.mxu0 0
      %1015 = vmatpush1.bf16.msra.mxu0 0
      %1016 = vmatprep.subr.bf16.mxu0 0
      %1017 = vmatpush1.bf16.msra.mxu0 %v997
      %1018 = vmatprep.subr.bf16.mxu0 0
      %1019 = vmatpush2.bf16.msra.mxu0 0
      %1020 = vmatprep.subr.bf16.mxu0 0
      %1021 = vmatpush2.bf16.msra.mxu0 0
      %1022 = vmatprep.subr.bf16.mxu0 0
      %1023 = vmatpush2.bf16.msra.mxu0 0
      %1024 = vmatprep.subr.bf16.mxu0 0
      %1025 = vmatpush2.bf16.msra.mxu0 0
      %1026 = vmatprep.subr.bf16.mxu0 0
      %1027 = vmatpush2.bf16.msra.mxu0 0
      %1028 = vmatprep.subr.bf16.mxu0 0
      %1029 = vmatpush2.bf16.msra.mxu0 0
      %1030 = vmatprep.subr.bf16.mxu0 0
      %1031 = vmatpush2.bf16.msra.mxu0 0
      %1032 = vmatprep.subr.bf16.mxu0 0
      %1033 = vmatpush2.bf16.msra.mxu0 0
      %1034 = vmatprep.mubr.bf16.mxu0 0
      %1035 = vmatmul.mubr.bf16.gmra.mxu0 %v1000
      %v1036 = vpop.f32.mrf.mxu0
      %v1037 = vadd.f32 0.0, %v1036
      %v1038 = vpop.f32.mrf.mxu0
      %v1039 = vpop.f32.mrf.mxu0
      %v1040 = vadd.f32 0.0, %v1039
      %v1041 = vpop.f32.mrf.mxu0
      %1042 = vdwg.mxu0
      %v1043 = vpack.c.bf16 %v1040, %v1037
      %1044 = vrot.lane.b32.xlu0 %v921, 112
      %v1045 = vpop.permute.xlu0 %1044
      %1046 = vrot.lane.b32.xlu0 %v921, 80
      %v1047 = vpop.permute.xlu0 %1046
      %v1049 = vsel %vm925, %v1045, 0
      %v1052 = vsel %vm925, %v1047, 0
      %1054 = vmatprep.subr.bf16.mxu0 0
      %1055 = vmatpush1.bf16.xpose.msra.mxu0 0
      %1056 = vmatprep.subr.bf16.mxu0 0
      %1057 = vmatpush1.bf16.xpose.msra.mxu0 0
      %1058 = vmatprep.subr.bf16.mxu0 0
      %1059 = vmatpush1.bf16.xpose.msra.mxu0 0
      %1060 = vmatprep.subr.bf16.mxu0 0
      %1061 = vmatpush1.bf16.xpose.msra.mxu0 0
      %1062 = vmatprep.subr.bf16.mxu0 0
      %1063 = vmatpush1.bf16.xpose.msra.mxu0 0
      %1064 = vmatprep.subr.bf16.mxu0 0
      %1065 = vmatpush1.bf16.xpose.msra.mxu0 0
      %1066 = vmatprep.subr.bf16.mxu0 0
      %1067 = vmatpush1.bf16.xpose.msra.mxu0 0
      %1068 = vmatprep.subr.bf16.mxu0 0
      %1069 = vmatpush1.bf16.xpose.msra.mxu0 %v1052
      %1070 = vmatprep.subr.bf16.mxu0 0
      %1071 = vmatpush2.bf16.xpose.msra.mxu0 0
      %1072 = vmatprep.subr.bf16.mxu0 0
      %1073 = vmatpush2.bf16.xpose.msra.mxu0 0
      %1074 = vmatprep.subr.bf16.mxu0 0
      %1075 = vmatpush2.bf16.xpose.msra.mxu0 0
      %1076 = vmatprep.subr.bf16.mxu0 0
      %1077 = vmatpush2.bf16.xpose.msra.mxu0 0
      %1078 = vmatprep.subr.bf16.mxu0 0
      %1079 = vmatpush2.bf16.xpose.msra.mxu0 0
      %1080 = vmatprep.subr.bf16.mxu0 0
      %1081 = vmatpush2.bf16.xpose.msra.mxu0 0
      %1082 = vmatprep.subr.bf16.mxu0 0
      %1083 = vmatpush2.bf16.xpose.msra.mxu0 0
      %1084 = vmatprep.subr.bf16.mxu0 0
      %1085 = vmatpush2.bf16.xpose.msra.mxu0 0
      %1086 = vmatprep.mubr.bf16.mxu0 0
      %1087 = vmatmul.mubr.bf16.gmra.mxu0 %v1049
      %v1088 = vpop.f32.mrf.mxu0
      %v1089 = vadd.f32 %v846, %v1088
      %v1090 = vpop.f32.mrf.mxu0
      %v1091 = vpop.f32.mrf.mxu0
      %v1092 = vadd.f32 %v847, %v1091
      %v1093 = vpop.f32.mrf.mxu0
      %1094 = vdwg.mxu0
      %v1095 = vsel %vm925, %v1089, -inf
      %1096 = vmax.xlane.f32.xlu0 %v1095
      %v1097 = vpop.xlane.xlu0 %1096
      %v1098 = vsel %vm925, %v1092, -inf
      %1099 = vmax.xlane.f32.xlu0 %v1098
      %v1100 = vpop.xlane.xlu0 %1099
      %v1101 = vsub.f32 %v1089, %v1097
      %v1102 = vsub.f32 %v1092, %v1100
      %v1103 = vmul.f32 %v1101, 1.442695
      %v1104 = vpow.pop %v1103
      %v1105 = vmul.f32 %v1102, 1.442695
      %v1106 = vpow.pop %v1105
      %v1107 = vsel %vm925, %v1104, 0.0
      %1108 = vadd.xlane.f32.xlu0 %v1107
      %v1109 = vpop.xlane.xlu0 %1108
      %v1110 = vsel %vm925, %v1106, 0.0
      %1111 = vadd.xlane.f32.xlu0 %v1110
      %v1112 = vpop.xlane.xlu0 %1111
      %v1113 = vrcp.pop %v1109
      %v1114 = vrcp.pop %v1112
      %v1115 = vmul.f32 %v1104, %v1113
      %v1116 = vmul.f32 %v1106, %v1114
      %v1117 = vpack.c.bf16 %v1116, %v1115
      %1118 = vrot.lane.b32.xlu0 %v921, 48
      %v1119 = vpop.permute.xlu0 %1118
      %v1122 = vsel %vm925, %v1117, 0
      %1124 = vmatprep.subr.bf16.mxu0 0
      %1125 = vmatpush1.bf16.msra.mxu0 0
      %1126 = vmatprep.subr.bf16.mxu0 0
      %1127 = vmatpush1.bf16.msra.mxu0 0
      %1128 = vmatprep.subr.bf16.mxu0 0
      %1129 = vmatpush1.bf16.msra.mxu0 0
      %1130 = vmatprep.subr.bf16.mxu0 0
      %1131 = vmatpush1.bf16.msra.mxu0 0
      %1132 = vmatprep.subr.bf16.mxu0 0
      %1133 = vmatpush1.bf16.msra.mxu0 0
      %1134 = vmatprep.subr.bf16.mxu0 0
      %1135 = vmatpush1.bf16.msra.mxu0 0
      %1136 = vmatprep.subr.bf16.mxu0 0
      %1137 = vmatpush1.bf16.msra.mxu0 0
      %1138 = vmatprep.subr.bf16.mxu0 0
      %1139 = vmatpush1.bf16.msra.mxu0 %v1119
      %1140 = vmatprep.subr.bf16.mxu0 0
      %1141 = vmatpush2.bf16.msra.mxu0 0
      %1142 = vmatprep.subr.bf16.mxu0 0
      %1143 = vmatpush2.bf16.msra.mxu0 0
      %1144 = vmatprep.subr.bf16.mxu0 0
      %1145 = vmatpush2.bf16.msra.mxu0 0
      %1146 = vmatprep.subr.bf16.mxu0 0
      %1147 = vmatpush2.bf16.msra.mxu0 0
      %1148 = vmatprep.subr.bf16.mxu0 0
      %1149 = vmatpush2.bf16.msra.mxu0 0
      %1150 = vmatprep.subr.bf16.mxu0 0
      %1151 = vmatpush2.bf16.msra.mxu0 0
      %1152 = vmatprep.subr.bf16.mxu0 0
      %1153 = vmatpush2.bf16.msra.mxu0 0
      %1154 = vmatprep.subr.bf16.mxu0 0
      %1155 = vmatpush2.bf16.msra.mxu0 0
      %1156 = vmatprep.mubr.bf16.mxu0 0
      %1157 = vmatmul.mubr.bf16.gmra.mxu0 %v1122
      %v1158 = vpop.f32.mrf.mxu0
      %v1159 = vadd.f32 0.0, %v1158
      %v1160 = vpop.f32.mrf.mxu0
      %v1161 = vpop.f32.mrf.mxu0
      %v1162 = vadd.f32 0.0, %v1161
      %v1163 = vpop.f32.mrf.mxu0
      %1164 = vdwg.mxu0
      %v1165 = vpack.c.bf16 %v1162, %v1159
      %v1168 = vunpack.c.l.b16 %v919
      %v1169 = vunpack.c.l.b16 %v920
      %v1170 = vpack.c.b16 %v1169, %v1168
      %v1173 = vsel %vm925, %v1165, 0
      %1175 = vmatprep.subr.bf16.mxu0 0
      %1176 = vmatpush1.bf16.msra.mxu0 0
      %1177 = vmatprep.subr.bf16.mxu0 0
      %1178 = vmatpush1.bf16.msra.mxu0 0
      %1179 = vmatprep.subr.bf16.mxu0 0
      %1180 = vmatpush1.bf16.msra.mxu0 0
      %1181 = vmatprep.subr.bf16.mxu0 0
      %1182 = vmatpush1.bf16.msra.mxu0 0
      %1183 = vmatprep.subr.bf16.mxu0 0
      %1184 = vmatpush1.bf16.msra.mxu0 0
      %1185 = vmatprep.subr.bf16.mxu0 0
      %1186 = vmatpush1.bf16.msra.mxu0 0
      %1187 = vmatprep.subr.bf16.mxu0 0
      %1188 = vmatpush1.bf16.msra.mxu0 0
      %1189 = vmatprep.subr.bf16.mxu0 0
      %1190 = vmatpush1.bf16.msra.mxu0 %v1170
      %1191 = vmatprep.subr.bf16.mxu0 0
      %1192 = vmatpush2.bf16.msra.mxu0 0
      %1193 = vmatprep.subr.bf16.mxu0 0
      %1194 = vmatpush2.bf16.msra.mxu0 0
      %1195 = vmatprep.subr.bf16.mxu0 0
      %1196 = vmatpush2.bf16.msra.mxu0 0
      %1197 = vmatprep.subr.bf16.mxu0 0
      %1198 = vmatpush2.bf16.msra.mxu0 0
      %1199 = vmatprep.subr.bf16.mxu0 0
      %1200 = vmatpush2.bf16.msra.mxu0 0
      %1201 = vmatprep.subr.bf16.mxu0 0
      %1202 = vmatpush2.bf16.msra.mxu0 0
      %1203 = vmatprep.subr.bf16.mxu0 0
      %1204 = vmatpush2.bf16.msra.mxu0 0
      %1205 = vmatprep.subr.bf16.mxu0 0
      %1206 = vmatpush2.bf16.msra.mxu0 0
      %1207 = vmatprep.mubr.bf16.mxu0 0
      %1208 = vmatmul.mubr.bf16.gmra.mxu0 %v1173
      %v1209 = vpop.f32.mrf.mxu0
      %v1210 = vadd.f32 0.0, %v1209
      %v1211 = vpop.f32.mrf.mxu0
      %v1212 = vpop.f32.mrf.mxu0
      %v1213 = vadd.f32 0.0, %v1212
      %v1214 = vpop.f32.mrf.mxu0
      %1215 = vdwg.mxu0
      %v1218 = vunpack.c.l.b16 %v917
      %v1219 = vunpack.c.l.b16 %v918
      %v1220 = vpack.c.b16 %v1219, %v1218
      %v1223 = vsel %vm925, %v1043, 0
      %1225 = vmatprep.subr.bf16.mxu0 0
      %1226 = vmatpush1.bf16.msra.mxu0 0
      %1227 = vmatprep.subr.bf16.mxu0 0
      %1228 = vmatpush1.bf16.msra.mxu0 0
      %1229 = vmatprep.subr.bf16.mxu0 0
      %1230 = vmatpush1.bf16.msra.mxu0 0
      %1231 = vmatprep.subr.bf16.mxu0 0
      %1232 = vmatpush1.bf16.msra.mxu0 0
      %1233 = vmatprep.subr.bf16.mxu0 0
      %1234 = vmatpush1.bf16.msra.mxu0 0
      %1235 = vmatprep.subr.bf16.mxu0 0
      %1236 = vmatpush1.bf16.msra.mxu0 0
      %1237 = vmatprep.subr.bf16.mxu0 0
      %1238 = vmatpush1.bf16.msra.mxu0 0
      %1239 = vmatprep.subr.bf16.mxu0 0
      %1240 = vmatpush1.bf16.msra.mxu0 %v1220
      %1241 = vmatprep.subr.bf16.mxu0 0
      %1242 = vmatpush2.bf16.msra.mxu0 0
      %1243 = vmatprep.subr.bf16.mxu0 0
      %1244 = vmatpush2.bf16.msra.mxu0 0
      %1245 = vmatprep.subr.bf16.mxu0 0
      %1246 = vmatpush2.bf16.msra.mxu0 0
      %1247 = vmatprep.subr.bf16.mxu0 0
      %1248 = vmatpush2.bf16.msra.mxu0 0
      %1249 = vmatprep.subr.bf16.mxu0 0
      %1250 = vmatpush2.bf16.msra.mxu0 0
      %1251 = vmatprep.subr.bf16.mxu0 0
      %1252 = vmatpush2.bf16.msra.mxu0 0
      %1253 = vmatprep.subr.bf16.mxu0 0
      %1254 = vmatpush2.bf16.msra.mxu0 0
      %1255 = vmatprep.subr.bf16.mxu0 0
      %1256 = vmatpush2.bf16.msra.mxu0 0
      %1257 = vmatprep.mubr.bf16.mxu0 0
      %1258 = vmatmul.mubr.bf16.gmra.mxu0 %v1223
      %v1259 = vpop.f32.mrf.mxu0
      %v1260 = vadd.f32 %v1210, %v1259
      %v1261 = vpop.f32.mrf.mxu0
      %v1262 = vpop.f32.mrf.mxu0
      %v1263 = vadd.f32 %v1213, %v1262
      %v1264 = vpop.f32.mrf.mxu0
      %1265 = vdwg.mxu0
      %v1266 = vld [vmem:[%s760] sm:$0x1]
      %v1268 = vlaneseq
      %v1269 = vshrl.u32 %v1268, 7
      %v1270 = vsub.s32 0, %v1269
      %v1271 = vrot.slane %v1266, %v1270
      %v1273 = vadd.f32 %v1260, %v1271
      %v1274 = vadd.f32 %v1263, %v1271
      %v1275 = vadd.f32 %v1273, %v844
      %v1276 = vadd.f32 %v1274, %v845
      %v1277 = vld [vmem:[%s763] sm:$0x1]
      %v1278 = vld [vmem:[%s766] sm:$0x1]
      %v1279 = vsel %vm872, %v1275, 0.0
      %1280 = vadd.xlane.f32.xlu0 %v1279
      %v1281 = vpop.xlane.xlu0 %1280
      %v1282 = vsel %vm872, %v1276, 0.0
      %1283 = vadd.xlane.f32.xlu0 %v1282
      %v1284 = vpop.xlane.xlu0 %1283
      %v1285 = vrcp.pop 32.0
      %v1286 = vmul.f32 %v1281, %v1285
      %v1287 = vmul.f32 %v1284, %v1285
      %v1288 = vsub.f32 %v1275, %v1286
      %v1289 = vsub.f32 %v1276, %v1287
      %v1290 = vmul.f32 %v1288, %v1288
      %v1291 = vmul.f32 %v1289, %v1289
      %v1292 = vsel %vm872, %v1290, 0.0
      %1293 = vadd.xlane.f32.xlu0 %v1292
      %v1294 = vpop.xlane.xlu0 %1293
      %v1295 = vsel %vm872, %v1291, 0.0
      %1296 = vadd.xlane.f32.xlu0 %v1295
      %v1297 = vpop.xlane.xlu0 %1296
      %v1298 = vmul.f32 %v1294, %v1285
      %v1299 = vmul.f32 %v1297, %v1285
      %v1300 = vadd.f32 %v1298, 1e-12
      %v1301 = vadd.f32 %v1299, 1e-12
      %v1302 = vrsqrt.pop %v1300
      %v1303 = vrsqrt.pop %v1301
      %v1304 = vmul.f32 %v1288, %v1302
      %v1305 = vmul.f32 %v1289, %v1303
      %v1307 = vlaneseq
      %v1308 = vshrl.u32 %v1307, 7
      %v1309 = vsub.s32 0, %v1308
      %v1310 = vrot.slane %v1277, %v1309
      %v1312 = vmul.f32 %v1304, %v1310
      %v1313 = vmul.f32 %v1305, %v1310
      %v1315 = vlaneseq
      %v1316 = vshrl.u32 %v1315, 7
      %v1317 = vsub.s32 0, %v1316
      %v1318 = vrot.slane %v1278, %v1317
      %v1320 = vadd.f32 %v1312, %v1318
      %v1321 = vadd.f32 %v1313, %v1318
      %v1322 = vpack.c.bf16 %v1321, %v1320
      %v1323 = vld [vmem:[%s771] sm:$0xf]
      %v1324 = vld [vmem:[%s771 + $0x4] sm:$0xf]
      %v1325 = vld [vmem:[%s771 + $0x8] sm:$0xf]
      %v1326 = vld [vmem:[%s771 + $0xc] sm:$0xf]
      %v1327 = vld [vmem:[%s774] sm:$0x1]
      %v1329 = vlaneseq
      %v1330 = vshrl.u32 %v1329, 7
      %v1331 = vsub.s32 0, %v1330
      %v1332 = vrot.slane %v1327, %v1331
      %v1338 = vunpack.c.l.b16 %v1323
      %v1339 = vunpack.c.l.b16 %v1324
      %v1340 = vunpack.c.l.b16 %v1325
      %v1341 = vunpack.c.l.b16 %v1326
      %v1342 = vpack.c.b16 %v1339, %v1338
      %v1343 = vpack.c.b16 %v1341, %v1340
      %v1347 = vsel %vm872, %v1322, 0
      %1349 = vmatprep.subr.bf16.mxu0 0
      %1350 = vmatpush1.bf16.msra.mxu0 0
      %1351 = vmatprep.subr.bf16.mxu0 0
      %1352 = vmatpush1.bf16.msra.mxu0 0
      %1353 = vmatprep.subr.bf16.mxu0 0
      %1354 = vmatpush1.bf16.msra.mxu0 0
      %1355 = vmatprep.subr.bf16.mxu0 0
      %1356 = vmatpush1.bf16.msra.mxu0 0
      %1357 = vmatprep.subr.bf16.mxu0 0
      %1358 = vmatpush1.bf16.msra.mxu0 0
      %1359 = vmatprep.subr.bf16.mxu0 0
      %1360 = vmatpush1.bf16.msra.mxu0 0
      %1361 = vmatprep.subr.bf16.mxu0 0
      %1362 = vmatpush1.bf16.msra.mxu0 %v1343
      %1363 = vmatprep.subr.bf16.mxu0 0
      %1364 = vmatpush1.bf16.msra.mxu0 %v1342
      %1365 = vmatprep.subr.bf16.mxu0 0
      %1366 = vmatpush2.bf16.msra.mxu0 0
      %1367 = vmatprep.subr.bf16.mxu0 0
      %1368 = vmatpush2.bf16.msra.mxu0 0
      %1369 = vmatprep.subr.bf16.mxu0 0
      %1370 = vmatpush2.bf16.msra.mxu0 0
      %1371 = vmatprep.subr.bf16.mxu0 0
      %1372 = vmatpush2.bf16.msra.mxu0 0
      %1373 = vmatprep.subr.bf16.mxu0 0
      %1374 = vmatpush2.bf16.msra.mxu0 0
      %1375 = vmatprep.subr.bf16.mxu0 0
      %1376 = vmatpush2.bf16.msra.mxu0 0
      %1377 = vmatprep.subr.bf16.mxu0 0
      %1378 = vmatpush2.bf16.msra.mxu0 0
      %1379 = vmatprep.subr.bf16.mxu0 0
      %1380 = vmatpush2.bf16.msra.mxu0 0
      %1381 = vmatprep.mubr.bf16.mxu0 0
      %1382 = vmatmul.mubr.bf16.gmra.mxu0 %v1347
      %v1383 = vpop.f32.mrf.mxu0
      %v1384 = vadd.f32 %v1332, %v1383
      %v1385 = vpop.f32.mrf.mxu0
      %v1386 = vpop.f32.mrf.mxu0
      %v1387 = vadd.f32 %v1332, %v1386
      %v1388 = vpop.f32.mrf.mxu0
      %1389 = vdwg.mxu0
      %v1390 = vmul.f32 %v1384, %v1384
      %v1391 = vmul.f32 %v1387, %v1387
      %v1392 = vmul.f32 %v1384, %v1390
      %v1393 = vmul.f32 %v1387, %v1391
      %v1394 = vmul.f32 %v1392, 0.044715
      %v1395 = vmul.f32 %v1393, 0.044715
      %v1396 = vadd.f32 %v1384, %v1394
      %v1397 = vadd.f32 %v1387, %v1395
      %v1398 = vmul.f32 %v1396, 0.7978846
      %v1399 = vmul.f32 %v1397, 0.7978846
      %v1400 = vtanh.pop %v1398
      %v1401 = vtanh.pop %v1399
      %v1402 = vadd.f32 %v1400, 1.0
      %v1403 = vadd.f32 %v1401, 1.0
      %v1404 = vmul.f32 %v1402, 0.5
      %v1405 = vmul.f32 %v1403, 0.5
      %v1406 = vmul.f32 %v1384, %v1404
      %v1407 = vmul.f32 %v1387, %v1405
      %v1408 = vpack.c.bf16 %v1407, %v1406
      %v1409 = vld [vmem:[%s779] sm:$0xf]
      %v1410 = vld [vmem:[%s779 + $0x4] sm:$0xf]
      %v1411 = vld [vmem:[%s779 + $0x8] sm:$0xf]
      %v1412 = vld [vmem:[%s779 + $0xc] sm:$0xf]
      %v1413 = vld [vmem:[%s779 + $0x10] sm:$0xf]
      %v1414 = vld [vmem:[%s779 + $0x14] sm:$0xf]
      %v1415 = vld [vmem:[%s779 + $0x18] sm:$0xf]
      %v1416 = vld [vmem:[%s779 + $0x1c] sm:$0xf]
      %v1417 = vld [vmem:[%s782] sm:$0x1]
      %v1419 = vlaneseq
      %v1420 = vshrl.u32 %v1419, 7
      %v1421 = vsub.s32 0, %v1420
      %v1422 = vrot.slane %v1417, %v1421
      %v1432 = vunpack.c.l.b16 %v1409
      %v1433 = vunpack.c.l.b16 %v1410
      %v1434 = vunpack.c.l.b16 %v1411
      %v1435 = vunpack.c.l.b16 %v1412
      %v1436 = vunpack.c.l.b16 %v1413
      %v1437 = vunpack.c.l.b16 %v1414
      %v1438 = vunpack.c.l.b16 %v1415
      %v1439 = vunpack.c.l.b16 %v1416
      %v1440 = vpack.c.b16 %v1433, %v1432
      %v1441 = vpack.c.b16 %v1435, %v1434
      %v1442 = vpack.c.b16 %v1437, %v1436
      %v1443 = vpack.c.b16 %v1439, %v1438
      %vm1448 = vcmask 523264
      %v1450 = vsel %vm1448, %v1408, 0
      %1452 = vmatprep.subr.bf16.mxu0 0
      %1453 = vmatpush1.bf16.msra.mxu0 0
      %1454 = vmatprep.subr.bf16.mxu0 0
      %1455 = vmatpush1.bf16.msra.mxu0 0
      %1456 = vmatprep.subr.bf16.mxu0 0
      %1457 = vmatpush1.bf16.msra.mxu0 0
      %1458 = vmatprep.subr.bf16.mxu0 0
      %1459 = vmatpush1.bf16.msra.mxu0 0
      %1460 = vmatprep.subr.bf16.mxu0 0
      %1461 = vmatpush1.bf16.msra.mxu0 %v1443
      %1462 = vmatprep.subr.bf16.mxu0 0
      %1463 = vmatpush1.bf16.msra.mxu0 %v1442
      %1464 = vmatprep.subr.bf16.mxu0 0
      %1465 = vmatpush1.bf16.msra.mxu0 %v1441
      %1466 = vmatprep.subr.bf16.mxu0 0
      %1467 = vmatpush1.bf16.msra.mxu0 %v1440
      %1468 = vmatprep.subr.bf16.mxu0 0
      %1469 = vmatpush2.bf16.msra.mxu0 0
      %1470 = vmatprep.subr.bf16.mxu0 0
      %1471 = vmatpush2.bf16.msra.mxu0 0
      %1472 = vmatprep.subr.bf16.mxu0 0
      %1473 = vmatpush2.bf16.msra.mxu0 0
      %1474 = vmatprep.subr.bf16.mxu0 0
      %1475 = vmatpush2.bf16.msra.mxu0 0
      %1476 = vmatprep.subr.bf16.mxu0 0
      %1477 = vmatpush2.bf16.msra.mxu0 0
      %1478 = vmatprep.subr.bf16.mxu0 0
      %1479 = vmatpush2.bf16.msra.mxu0 0
      %1480 = vmatprep.subr.bf16.mxu0 0
      %1481 = vmatpush2.bf16.msra.mxu0 0
      %1482 = vmatprep.subr.bf16.mxu0 0
      %1483 = vmatpush2.bf16.msra.mxu0 0
      %1484 = vmatprep.mubr.bf16.mxu0 0
      %1485 = vmatmul.mubr.bf16.gmra.mxu0 %v1450
      %v1486 = vpop.f32.mrf.mxu0
      %v1487 = vadd.f32 %v1422, %v1486
      %v1488 = vpop.f32.mrf.mxu0
      %v1489 = vpop.f32.mrf.mxu0
      %v1490 = vadd.f32 %v1422, %v1489
      %v1491 = vpop.f32.mrf.mxu0
      %1492 = vdwg.mxu0
      %v1493 = vadd.f32 %v1487, %v1320
      %v1494 = vadd.f32 %v1490, %v1321
      %v1495 = vld [vmem:[%s785] sm:$0x1]
      %v1496 = vld [vmem:[%s788] sm:$0x1]
      %v1497 = vsel %vm872, %v1493, 0.0
      %1498 = vadd.xlane.f32.xlu0 %v1497
      %v1499 = vpop.xlane.xlu0 %1498
      %v1500 = vsel %vm872, %v1494, 0.0
      %1501 = vadd.xlane.f32.xlu0 %v1500
      %v1502 = vpop.xlane.xlu0 %1501
      %v1503 = vmul.f32 %v1499, %v1285
      %v1504 = vmul.f32 %v1502, %v1285
      %v1505 = vsub.f32 %v1493, %v1503
      %v1506 = vsub.f32 %v1494, %v1504
      %v1507 = vmul.f32 %v1505, %v1505
      %v1508 = vmul.f32 %v1506, %v1506
      %v1509 = vsel %vm872, %v1507, 0.0
      %1510 = vadd.xlane.f32.xlu0 %v1509
      %v1511 = vpop.xlane.xlu0 %1510
      %v1512 = vsel %vm872, %v1508, 0.0
      %1513 = vadd.xlane.f32.xlu0 %v1512
      %v1514 = vpop.xlane.xlu0 %1513
      %v1515 = vmul.f32 %v1511, %v1285
      %v1516 = vmul.f32 %v1514, %v1285
      %v1517 = vadd.f32 %v1515, 1e-12
      %v1518 = vadd.f32 %v1516, 1e-12
      %v1519 = vrsqrt.pop %v1517
      %v1520 = vrsqrt.pop %v1518
      %v1521 = vmul.f32 %v1505, %v1519
      %v1522 = vmul.f32 %v1506, %v1520
      %v1524 = vlaneseq
      %v1525 = vshrl.u32 %v1524, 7
      %v1526 = vsub.s32 0, %v1525
      %v1527 = vrot.slane %v1495, %v1526
      %v1529 = vmul.f32 %v1521, %v1527
      %v1530 = vmul.f32 %v1522, %v1527
      %v1532 = vlaneseq
      %v1533 = vshrl.u32 %v1532, 7
      %v1534 = vsub.s32 0, %v1533
      %v1535 = vrot.slane %v1496, %v1534
      %v1537 = vadd.f32 %v1529, %v1535
      %v1538 = vadd.f32 %v1530, %v1535
      %1539 = vst.msk [vmem:[#allocation2] sm:$0xff] %vm872, %v1537
      %1540 = vst.msk [vmem:[#allocation2 + $0x8] sm:$0xff] %vm872, %v1538
      %p1541 = scmp.eq.s32.totalorder %s33, 1
      // Predicated region
      $region105: #{fine_bert_forward.1} parent=99 // pred_check
        %p1542 = pneg %p1541
      $region106: #{fine_bert_forward.1} parent=99 // pred_check_branch
        %1544 = sbr.rel (%p1542) target = $region108
      $region107: #{fine_bert_forward.1} parent=99 // pred_region
        %v1545 = vpack.c.bf16 %v1538, %v1537
        %v1546 = vld [vmem:[%s16] sm:$0xf]
        %v1547 = vld [vmem:[%s16 + $0x4] sm:$0xf]
        %v1548 = vld [vmem:[%s16 + $0x8] sm:$0xf]
        %v1549 = vld [vmem:[%s16 + $0xc] sm:$0xf]
        %v1550 = vld [vmem:[%s17] sm:$0x1]
        %v1552 = vlaneseq
        %v1553 = vshrl.u32 %v1552, 7
        %v1554 = vsub.s32 0, %v1553
        %v1555 = vrot.slane %v1550, %v1554
        %v1561 = vunpack.c.l.b16 %v1546
        %v1562 = vunpack.c.l.b16 %v1547
        %v1563 = vunpack.c.l.b16 %v1548
        %v1564 = vunpack.c.l.b16 %v1549
        %v1565 = vpack.c.b16 %v1562, %v1561
        %v1566 = vpack.c.b16 %v1564, %v1563
        %v1570 = vsel %vm872, %v1545, 0
        %1572 = vmatprep.subr.bf16.mxu0 0
        %1573 = vmatpush1.bf16.msra.mxu0 0
        %1574 = vmatprep.subr.bf16.mxu0 0
        %1575 = vmatpush1.bf16.msra.mxu0 0
        %1576 = vmatprep.subr.bf16.mxu0 0
        %1577 = vmatpush1.bf16.msra.mxu0 0
        %1578 = vmatprep.subr.bf16.mxu0 0
        %1579 = vmatpush1.bf16.msra.mxu0 0
        %1580 = vmatprep.subr.bf16.mxu0 0
        %1581 = vmatpush1.bf16.msra.mxu0 0
        %1582 = vmatprep.subr.bf16.mxu0 0
        %1583 = vmatpush1.bf16.msra.mxu0 0
        %1584 = vmatprep.subr.bf16.mxu0 0
        %1585 = vmatpush1.bf16.msra.mxu0 %v1566
        %1586 = vmatprep.subr.bf16.mxu0 0
        %1587 = vmatpush1.bf16.msra.mxu0 %v1565
        %1588 = vmatprep.subr.bf16.mxu0 0
        %1589 = vmatpush2.bf16.msra.mxu0 0
        %1590 = vmatprep.subr.bf16.mxu0 0
        %1591 = vmatpush2.bf16.msra.mxu0 0
        %1592 = vmatprep.subr.bf16.mxu0 0
        %1593 = vmatpush2.bf16.msra.mxu0 0
        %1594 = vmatprep.subr.bf16.mxu0 0
        %1595 = vmatpush2.bf16.msra.mxu0 0
        %1596 = vmatprep.subr.bf16.mxu0 0
        %1597 = vmatpush2.bf16.msra.mxu0 0
        %1598 = vmatprep.subr.bf16.mxu0 0
        %1599 = vmatpush2.bf16.msra.mxu0 0
        %1600 = vmatprep.subr.bf16.mxu0 0
        %1601 = vmatpush2.bf16.msra.mxu0 0
        %1602 = vmatprep.subr.bf16.mxu0 0
        %1603 = vmatpush2.bf16.msra.mxu0 0
        %1604 = vmatprep.mubr.bf16.mxu0 0
        %1605 = vmatmul.mubr.bf16.gmra.mxu0 %v1570
        %v1606 = vpop.f32.mrf.mxu0
        %v1607 = vadd.f32 %v1555, %v1606
        %v1608 = vpop.f32.mrf.mxu0
        %v1609 = vpop.f32.mrf.mxu0
        %v1610 = vadd.f32 %v1555, %v1609
        %v1611 = vpop.f32.mrf.mxu0
        %1612 = vdwg.mxu0
        %v1613 = vtanh.pop %v1607
        %v1614 = vtanh.pop %v1610
        %v1615 = vpack.c.bf16 %v1614, %v1613
        %v1616 = vld [vmem:[%s18] sm:$0xf]
        %v1617 = vld [vmem:[%s18 + $0x4] sm:$0xf]
        %v1618 = vld [vmem:[%s18 + $0x8] sm:$0xf]
        %v1619 = vld [vmem:[%s18 + $0xc] sm:$0xf]
        %v1620 = vld [vmem:[#allocation3] sm:$0x1]
        %v1622 = vlaneseq
        %v1623 = vshrl.u32 %v1622, 7
        %v1624 = vsub.s32 0, %v1623
        %v1625 = vrot.slane %v1620, %v1624
        %v1631 = vunpack.c.l.b16 %v1616
        %v1632 = vunpack.c.l.b16 %v1617
        %v1633 = vunpack.c.l.b16 %v1618
        %v1634 = vunpack.c.l.b16 %v1619
        %v1635 = vpack.c.b16 %v1632, %v1631
        %v1636 = vpack.c.b16 %v1634, %v1633
        %v1640 = vsel %vm872, %v1615, 0
        %1642 = vmatprep.subr.bf16.mxu0 0
        %1643 = vmatpush1.bf16.msra.mxu0 0
        %1644 = vmatprep.subr.bf16.mxu0 0
        %1645 = vmatpush1.bf16.msra.mxu0 0
        %1646 = vmatprep.subr.bf16.mxu0 0
        %1647 = vmatpush1.bf16.msra.mxu0 0
        %1648 = vmatprep.subr.bf16.mxu0 0
        %1649 = vmatpush1.bf16.msra.mxu0 0
        %1650 = vmatprep.subr.bf16.mxu0 0
        %1651 = vmatpush1.bf16.msra.mxu0 0
        %1652 = vmatprep.subr.bf16.mxu0 0
        %1653 = vmatpush1.bf16.msra.mxu0 0
        %1654 = vmatprep.subr.bf16.mxu0 0
        %1655 = vmatpush1.bf16.msra.mxu0 %v1636
        %1656 = vmatprep.subr.bf16.mxu0 0
        %1657 = vmatpush1.bf16.msra.mxu0 %v1635
        %1658 = vmatprep.subr.bf16.mxu0 0
        %1659 = vmatpush2.bf16.msra.mxu0 0
        %1660 = vmatprep.subr.bf16.mxu0 0
        %1661 = vmatpush2.bf16.msra.mxu0 0
        %1662 = vmatprep.subr.bf16.mxu0 0
        %1663 = vmatpush2.bf16.msra.mxu0 0
        %1664 = vmatprep.subr.bf16.mxu0 0
        %1665 = vmatpush2.bf16.msra.mxu0 0
        %1666 = vmatprep.subr.bf16.mxu0 0
        %1667 = vmatpush2.bf16.msra.mxu0 0
        %1668 = vmatprep.subr.bf16.mxu0 0
        %1669 = vmatpush2.bf16.msra.mxu0 0
        %1670 = vmatprep.subr.bf16.mxu0 0
        %1671 = vmatpush2.bf16.msra.mxu0 0
        %1672 = vmatprep.subr.bf16.mxu0 0
        %1673 = vmatpush2.bf16.msra.mxu0 0
        %1674 = vmatprep.mubr.bf16.mxu0 0
        %1675 = vmatmul.mubr.bf16.gmra.mxu0 %v1640
        %v1676 = vpop.f32.mrf.mxu0
        %v1677 = vadd.f32 %v1625, %v1676
        %v1678 = vpop.f32.mrf.mxu0
        %v1679 = vpop.f32.mrf.mxu0
        %v1680 = vadd.f32 %v1625, %v1679
        %v1681 = vpop.f32.mrf.mxu0
        %1682 = vdwg.mxu0
        %vm1683 = vcmask 7168
        %1684 = vst.msk [vmem:[%s20] sm:$0xff] %vm1683, %v1677
        %1685 = vst.msk [vmem:[%s20 + $0x8] sm:$0xff] %vm1683, %v1680
      $region108: #{fine_bert_forward.1} parent=99 // pred_fallthru
        _
      // Predicated region
      $region109: #{fine_bert_forward.1} parent=99 // pred_check
        %p1686 = pneg %p526
      $region110: #{fine_bert_forward.1} parent=99 // pred_check_branch
        %1688 = sbr.rel (%p1686) target = $region112
      $region111: #{fine_bert_forward.1} parent=99 // pred_region
        _
      $region112: #{fine_bert_forward.1} parent=99 // pred_fallthru
        _
      // Predicated region
      $region113: #{fine_bert_forward.1} parent=99 // pred_check
        %p1689 = pneg %p526
      $region114: #{fine_bert_forward.1} parent=99 // pred_check_branch
        %1691 = sbr.rel (%p1689) target = $region116
      $region115: #{fine_bert_forward.1} parent=99 // pred_region
        _
      $region116: #{fine_bert_forward.1} parent=99 // pred_fallthru
        _
    $region100: #{fine_bert_forward.1} parent=5 // pred_fallthru
      _
    %p1692 = scmp.le.s32.totalorder 2, %s28
    // Predicated region
    $region117: #{fine_bert_forward.1} parent=5 // pred_check
      %p1693 = pneg %p1692
    $region118: #{fine_bert_forward.1} parent=5 // pred_check_branch
      %1695 = sbr.rel (%p1693) target = $region120
    $region119: #{fine_bert_forward.1} parent=5 // pred_region
      %s1696 = ssub.s32 %s28, 2
    $region120: #{fine_bert_forward.1} parent=5 // pred_fallthru
      _
  $region6: #{fine_bert_forward.1} parent=0 // loop_footer
    %s32 = sadd.s32 1, %s28
  $region7: #{fine_bert_forward.1} parent=0 // loop_footer_branch
    %27 = sbr.rel target = $region3
  $region8: #{fine_bert_forward.1} parent=0 // loop_exit
    _

</llo_original>
